<compile_context>
chip_gen: v6e
topology: v6e:2x2x1
jax: 0.10.0
libtpu: 0.0.40
codegen_flags: <defaults>
</compile_context>

<pallas_src>
from functools import partial

import jax
import jax.numpy as jnp
from jax import lax
from jax.experimental import pallas as pl
from jax.experimental.pallas import tpu as pltpu

WIDTH = 32
IN_DIM = 2
OUT_DIM = 1
LANE = 128


def mlp_kernel(x_ref,
               w1_ref, b1_ref,
               w2_ref, b2_ref,
               w3_ref, b3_ref,
               w4_ref, b4_ref,
               o_ref,
               *, bf16_act):
    # x: (IN_DIM, tile_n), activations: (WIDTH, tile_n), out: (OUT_DIM, tile_n)
    x = x_ref[...]
    w1 = w1_ref[...]  # (WIDTH, IN_DIM), float32

    act_dtype = jnp.bfloat16 if bf16_act else jnp.float32

    # Layer 1: K=2 contraction as two rank-1 broadcast multiply-adds (VPU).
    z1 = w1[:, 0:1] * x[0:1, :] + w1[:, 1:2] * x[1:2, :] + b1_ref[...]
    h = jnp.tanh(z1.astype(act_dtype))

    if bf16_act:
        # bf16 activations feed the MXU natively (weights pre-cast to bf16 in the
        # wrapper); accumulation stays f32 via preferred_element_type. The tanh
        # runs on packed bf16 vregs -> ~2x throughput on the saturating EUP slot.
        z2 = jnp.dot(w2_ref[...], h, preferred_element_type=jnp.float32) + b2_ref[...]
        h = jnp.tanh(z2.astype(act_dtype))
        z3 = jnp.dot(w3_ref[...], h, preferred_element_type=jnp.float32) + b3_ref[...]
        h = jnp.tanh(z3.astype(act_dtype))
        y = jnp.dot(w4_ref[...], h, preferred_element_type=jnp.float32) + b4_ref[...]
    else:
        # Full f32 path (v5e and accuracy checks). MXU is far from the bottleneck
        # so the multi-pass HIGHEST-precision f32 matmul is essentially free.
        hp = lax.Precision.HIGHEST
        z2 = jnp.dot(w2_ref[...], h, preferred_element_type=jnp.float32,
                     precision=hp) + b2_ref[...]
        h = jnp.tanh(z2)
        z3 = jnp.dot(w3_ref[...], h, preferred_element_type=jnp.float32,
                     precision=hp) + b3_ref[...]
        h = jnp.tanh(z3)
        y = jnp.dot(w4_ref[...], h, preferred_element_type=jnp.float32,
                    precision=hp) + b4_ref[...]

    o_ref[...] = y.astype(o_ref.dtype)


def _cdiv(a, b):
    return -(-a // b)


def _device_kind():
    try:
        return jax.devices()[0].device_kind.lower()
    except Exception:  # pragma: no cover - defensive
        return ""


def _bf16_eup_capable(kind):
    # v6e / v7x have bf16-capable VPU/EUP; v5e (and older) do not.
    return any(tag in kind for tag in ("v6", "v7", "7x"))


def _choose_tiling(n, target_tile_n):
    """Split the lane-padded batch into near-equal tiles (multiples of 128).

    Bounds padding waste to < num_tiles*128 columns (vs up to tile_n-128 with a
    plain round-up-to-tile), and forces >=2 grid steps when possible so the
    'parallel' axis can be sharded across both v7x TensorCores.
    """
    groups = max(1, _cdiv(n, LANE))              # 128-lane groups of real data
    target_groups = max(1, target_tile_n // LANE)
    num_tiles = _cdiv(groups, target_groups)
    if groups >= 2:
        num_tiles = max(num_tiles, 2)            # give both TCs work on v7x
    groups_per_tile = _cdiv(groups, num_tiles)
    tile_n = groups_per_tile * LANE
    n_pad = num_tiles * tile_n
    return tile_n, n_pad, num_tiles


def net_forward(x, params, *, target_tile_n=None, use_bf16_act=None):
    """4-layer tanh MLP forward pass with a Pallas TPU kernel.

    x:      (N, 2) float32
    params: dict with torch-layout weights:
            w1 (32,2), b1 (32,1), w2/w3 (32,32), b2/b3 (32,1), w4 (1,32), b4 (1,1)
    """
    n, in_dim = x.shape
    assert in_dim == IN_DIM

    kind = _device_kind()
    if use_bf16_act is None:
        use_bf16_act = _bf16_eup_capable(kind)
    if target_tile_n is None:
        # ~8 MiB peak VMEM at 16K columns (v6e/v7x); 8K keeps ample headroom on
        # v5e's smaller 16 MiB scoped-VMEM default.
        target_tile_n = 16384 if _bf16_eup_capable(kind) else 8192

    tile_n, n_pad, _num_tiles = _choose_tiling(n, target_tile_n)
    grid = (n_pad // tile_n,)

    # Feature-major layout: batch on the lane axis, zero-padded (finite!) so the
    # pad region stays finite through tanh/dot and is sliced off at the end.
    xt = x.T
    if n_pad != n:
        xt = jnp.pad(xt, ((0, 0), (0, n_pad - n)))

    # Hidden/output weights in bf16 when the bf16 activation path is on; biases
    # and the tiny first layer stay f32.
    w_dtype = jnp.bfloat16 if use_bf16_act else jnp.float32
    w2 = params["w2"].astype(w_dtype)
    w3 = params["w3"].astype(w_dtype)
    w4 = params["w4"].astype(w_dtype)

    # Grid-invariant full blocks for weights/biases (~4.5 KB total).
    def full(shape):
        return pl.BlockSpec(shape, lambda i: (0, 0))

    in_specs = [
        pl.BlockSpec((IN_DIM, tile_n), lambda i: (0, i)),          # x (batch-tiled)
        full((WIDTH, IN_DIM)), full((WIDTH, 1)),                    # layer 1
        full((WIDTH, WIDTH)), full((WIDTH, 1)),                     # layer 2
        full((WIDTH, WIDTH)), full((WIDTH, 1)),                     # layer 3
        full((OUT_DIM, WIDTH)), full((OUT_DIM, 1)),                 # output layer
    ]
    out_spec = pl.BlockSpec((OUT_DIM, tile_n), lambda i: (0, i))

    flops_per_row = (2 * IN_DIM * WIDTH
                     + 2 * 2 * WIDTH * WIDTH
                     + 2 * WIDTH * OUT_DIM)
    cost = pl.CostEstimate(
        flops=n_pad * flops_per_row,
        transcendentals=n_pad * 3 * WIDTH,
        bytes_accessed=n_pad * (IN_DIM + OUT_DIM) * 4,
    )

    out_t = pl.pallas_call(
        partial(mlp_kernel, bf16_act=use_bf16_act),
        out_shape=jax.ShapeDtypeStruct((OUT_DIM, n_pad), jnp.float32),
        grid_spec=pltpu.PrefetchScalarGridSpec(
            num_scalar_prefetch=0,
            grid=grid,
            in_specs=in_specs,
            out_specs=out_spec,
        ),
        compiler_params=pltpu.CompilerParams(
            dimension_semantics=("parallel",),
        ),
        cost_estimate=cost,
    )(
        xt,
        params["w1"], params["b1"],
        w2, params["b2"],
        w3, params["b3"],
        w4, params["b4"],
    )

    # Back to the torch convention: (N, 1).
    return out_t[:, :n].T


def init_params(key):
    """Deterministic init mimicking torch.nn.Linear: U(-1/sqrt(fan_in), +).

    Weights stored (out, in), biases stored (out, 1)."""
    def linear(key, fan_in, fan_out):
        kw, kb = jax.random.split(key)
        bound = 1.0 / jnp.sqrt(fan_in)
        w = jax.random.uniform(kw, (fan_out, fan_in), jnp.float32, -bound, bound)
        b = jax.random.uniform(kb, (fan_out, 1), jnp.float32, -bound, bound)
        return w, b

    k1, k2, k3, k4 = jax.random.split(key, 4)
    w1, b1 = linear(k1, IN_DIM, WIDTH)
    w2, b2 = linear(k2, WIDTH, WIDTH)
    w3, b3 = linear(k3, WIDTH, WIDTH)
    w4, b4 = linear(k4, WIDTH, OUT_DIM)
    return dict(w1=w1, b1=b1, w2=w2, b2=b2, w3=w3, b3=b3, w4=w4, b4=b4)


def reference_forward(x, p):
    # Same math in plain JAX (torch.nn.Linear convention: x @ W.T + b),
    # full f32 matmuls to serve as the accuracy reference.
    hp = lax.Precision.HIGHEST
    h = jnp.tanh(jnp.dot(x, p["w1"].T, precision=hp) + p["b1"].T)
    h = jnp.tanh(jnp.dot(h, p["w2"].T, precision=hp) + p["b2"].T)
    h = jnp.tanh(jnp.dot(h, p["w3"].T, precision=hp) + p["b3"].T)
    return jnp.dot(h, p["w4"].T, precision=hp) + p["b4"].T


if __name__ == "__main__":
    key = jax.random.PRNGKey(0)
    kx, kx2, kp = jax.random.split(key, 3)
    params = init_params(kp)

    # Test A: small batch, forced f32 path -> tight tolerance vs f32 reference.
    N1 = 8
    x1 = jax.random.normal(kx, (N1, IN_DIM), jnp.float32)
    out1 = jax.block_until_ready(net_forward(x1, params, use_bf16_act=False))
    ref1 = reference_forward(x1, params)
    assert out1.shape == (N1, OUT_DIM)
    assert jnp.allclose(out1, ref1, atol=1e-5, rtol=1e-5), "f32 path mismatch"

    # Test B: multi-tile batch with padding, auto (gen-dependent) activation
    # dtype -> looser tolerance that also covers the bf16-tanh path.
    N2 = 300
    x2 = jax.random.normal(kx2, (N2, IN_DIM), jnp.float32)
    out2 = jax.block_until_ready(net_forward(x2, params))
    ref2 = reference_forward(x2, params)
    assert out2.shape == (N2, OUT_DIM)
    assert jnp.allclose(out2, ref2, atol=3e-2, rtol=3e-2), "auto path mismatch"

    print("KERNEL_OK")
</pallas_src>

<mosaic_0001>
module attributes {stable_mosaic.version = 11 : i64} {
  func.func @mlp_kernel(%arg0: i32, %arg1: memref<2x128xf32, #tpu.memory_space<vmem>>, %arg2: memref<32x2xf32, #tpu.memory_space<vmem>>, %arg3: memref<32x1xf32, #tpu.memory_space<vmem>>, %arg4: memref<32x32xf32, #tpu.memory_space<vmem>>, %arg5: memref<32x1xf32, #tpu.memory_space<vmem>>, %arg6: memref<32x32xf32, #tpu.memory_space<vmem>>, %arg7: memref<32x1xf32, #tpu.memory_space<vmem>>, %arg8: memref<1x32xf32, #tpu.memory_space<vmem>>, %arg9: memref<1x1xf32, #tpu.memory_space<vmem>>, %arg10: memref<1x128xf32, #tpu.memory_space<vmem>>) attributes {dimension_semantics = [#tpu.dimension_semantics<parallel>], iteration_bounds = array<i64: 1>, scalar_prefetch = 0 : i64, scratch_operands = 0 : i64, tpu.core_type = #tpu.core_type<tc>, window_params = [{transform_indices = @transform_0, window_bounds = array<i64: 2, 128>}, {pipeline_mode = #tpu.pipeline_mode<synchronous>, transform_indices = @transform_1, window_bounds = array<i64: 32, 2>}, {pipeline_mode = #tpu.pipeline_mode<synchronous>, transform_indices = @transform_2, window_bounds = array<i64: 32, 1>}, {pipeline_mode = #tpu.pipeline_mode<synchronous>, transform_indices = @transform_3, window_bounds = array<i64: 32, 32>}, {pipeline_mode = #tpu.pipeline_mode<synchronous>, transform_indices = @transform_4, window_bounds = array<i64: 32, 1>}, {pipeline_mode = #tpu.pipeline_mode<synchronous>, transform_indices = @transform_5, window_bounds = array<i64: 32, 32>}, {pipeline_mode = #tpu.pipeline_mode<synchronous>, transform_indices = @transform_6, window_bounds = array<i64: 32, 1>}, {pipeline_mode = #tpu.pipeline_mode<synchronous>, transform_indices = @transform_7, window_bounds = array<i64: 1, 32>}, {pipeline_mode = #tpu.pipeline_mode<synchronous>, transform_indices = @transform_8, window_bounds = array<i64: 1, 1>}, {transform_indices = @transform_9, window_bounds = array<i64: 1, 128>}]} {
    %c0 = arith.constant 0 : index
    %c0_0 = arith.constant 0 : index
    %0 = vector.load %arg1[%c0, %c0_0] : memref<2x128xf32, #tpu.memory_space<vmem>>, vector<2x128xf32>
    %c0_1 = arith.constant 0 : index
    %c0_2 = arith.constant 0 : index
    %1 = vector.load %arg2[%c0_1, %c0_2] : memref<32x2xf32, #tpu.memory_space<vmem>>, vector<32x2xf32>
    %2 = vector.extract_strided_slice %1 {offsets = [0, 0], sizes = [32, 1], strides = [1, 1]} : vector<32x2xf32> to vector<32x1xf32>
    %3 = vector.extract_strided_slice %0 {offsets = [0, 0], sizes = [1, 128], strides = [1, 1]} : vector<2x128xf32> to vector<1x128xf32>
    %4 = vector.broadcast %2 : vector<32x1xf32> to vector<32x128xf32>
    %5 = vector.broadcast %3 : vector<1x128xf32> to vector<32x128xf32>
    %6 = arith.mulf %4, %5 : vector<32x128xf32>
    %7 = vector.extract_strided_slice %1 {offsets = [0, 1], sizes = [32, 1], strides = [1, 1]} : vector<32x2xf32> to vector<32x1xf32>
    %8 = vector.extract_strided_slice %0 {offsets = [1, 0], sizes = [1, 128], strides = [1, 1]} : vector<2x128xf32> to vector<1x128xf32>
    %9 = vector.broadcast %7 : vector<32x1xf32> to vector<32x128xf32>
    %10 = vector.broadcast %8 : vector<1x128xf32> to vector<32x128xf32>
    %11 = arith.mulf %9, %10 : vector<32x128xf32>
    %12 = arith.addf %6, %11 : vector<32x128xf32>
    %c0_3 = arith.constant 0 : index
    %c0_4 = arith.constant 0 : index
    %13 = vector.load %arg3[%c0_3, %c0_4] : memref<32x1xf32, #tpu.memory_space<vmem>>, vector<32x1xf32>
    %14 = vector.broadcast %13 : vector<32x1xf32> to vector<32x128xf32>
    %15 = arith.addf %12, %14 : vector<32x128xf32>
    %16 = math.tanh %15 : vector<32x128xf32>
    %c0_5 = arith.constant 0 : index
    %c0_6 = arith.constant 0 : index
    %17 = vector.load %arg4[%c0_5, %c0_6] : memref<32x32xf32, #tpu.memory_space<vmem>>, vector<32x32xf32>
    %cst = arith.constant dense<0.000000e+00> : vector<32x128xf32>
    %18 = tpu.matmul %17, %16, %cst {dimension_numbers = #tpu.dot_dimension_numbers<[1], [0], [0], [1], [0, 0, 1, 1], [], []>, precision = #tpu.contract_precision<fp32>} : vector<32x32xf32>, vector<32x128xf32>, vector<32x128xf32> -> vector<32x128xf32>
    %c0_7 = arith.constant 0 : index
    %c0_8 = arith.constant 0 : index
    %19 = vector.load %arg5[%c0_7, %c0_8] : memref<32x1xf32, #tpu.memory_space<vmem>>, vector<32x1xf32>
    %20 = vector.broadcast %19 : vector<32x1xf32> to vector<32x128xf32>
    %21 = arith.addf %18, %20 : vector<32x128xf32>
    %22 = math.tanh %21 : vector<32x128xf32>
    %c0_9 = arith.constant 0 : index
    %c0_10 = arith.constant 0 : index
    %23 = vector.load %arg6[%c0_9, %c0_10] : memref<32x32xf32, #tpu.memory_space<vmem>>, vector<32x32xf32>
    %cst_11 = arith.constant dense<0.000000e+00> : vector<32x128xf32>
    %24 = tpu.matmul %23, %22, %cst_11 {dimension_numbers = #tpu.dot_dimension_numbers<[1], [0], [0], [1], [0, 0, 1, 1], [], []>, precision = #tpu.contract_precision<fp32>} : vector<32x32xf32>, vector<32x128xf32>, vector<32x128xf32> -> vector<32x128xf32>
    %c0_12 = arith.constant 0 : index
    %c0_13 = arith.constant 0 : index
    %25 = vector.load %arg7[%c0_12, %c0_13] : memref<32x1xf32, #tpu.memory_space<vmem>>, vector<32x1xf32>
    %26 = vector.broadcast %25 : vector<32x1xf32> to vector<32x128xf32>
    %27 = arith.addf %24, %26 : vector<32x128xf32>
    %28 = math.tanh %27 : vector<32x128xf32>
    %c0_14 = arith.constant 0 : index
    %c0_15 = arith.constant 0 : index
    %29 = vector.load %arg8[%c0_14, %c0_15] : memref<1x32xf32, #tpu.memory_space<vmem>>, vector<1x32xf32>
    %cst_16 = arith.constant dense<0.000000e+00> : vector<1x128xf32>
    %30 = tpu.matmul %29, %28, %cst_16 {dimension_numbers = #tpu.dot_dimension_numbers<[1], [0], [0], [1], [0, 0, 1, 1], [], []>, precision = #tpu.contract_precision<fp32>} : vector<1x32xf32>, vector<32x128xf32>, vector<1x128xf32> -> vector<1x128xf32>
    %c0_17 = arith.constant 0 : index
    %c0_18 = arith.constant 0 : index
    %31 = vector.load %arg9[%c0_17, %c0_18] : memref<1x1xf32, #tpu.memory_space<vmem>>, vector<1x1xf32>
    %32 = vector.broadcast %31 : vector<1x1xf32> to vector<1x128xf32>
    %33 = arith.addf %30, %32 : vector<1x128xf32>
    %c0_19 = arith.constant 0 : index
    %c0_20 = arith.constant 0 : index
    %34 = vector.load %arg10[%c0_19, %c0_20] : memref<1x128xf32, #tpu.memory_space<vmem>>, vector<1x128xf32>
    tpu.vector_store %arg10[%c0_19, %c0_20], %33 {strides = array<i32>} : memref<1x128xf32, #tpu.memory_space<vmem>>, vector<1x128xf32>,
    return
  }
  func.func @transform_0(%arg0: i32) -> (i32, i32) {
    %c0_i32 = arith.constant 0 : i32
    %c0_i32_0 = arith.constant 0 : i32
    return %c0_i32, %arg0 : i32, i32
  }
  func.func @transform_1(%arg0: i32) -> (i32, i32) {
    %c0_i32 = arith.constant 0 : i32
    %c0_i32_0 = arith.constant 0 : i32
    %c0_i32_1 = arith.constant 0 : i32
    return %c0_i32, %c0_i32_0 : i32, i32
  }
  func.func @transform_2(%arg0: i32) -> (i32, i32) {
    %c0_i32 = arith.constant 0 : i32
    %c0_i32_0 = arith.constant 0 : i32
    %c0_i32_1 = arith.constant 0 : i32
    return %c0_i32, %c0_i32_0 : i32, i32
  }
  func.func @transform_3(%arg0: i32) -> (i32, i32) {
    %c0_i32 = arith.constant 0 : i32
    %c0_i32_0 = arith.constant 0 : i32
    %c0_i32_1 = arith.constant 0 : i32
    return %c0_i32, %c0_i32_0 : i32, i32
  }
  func.func @transform_4(%arg0: i32) -> (i32, i32) {
    %c0_i32 = arith.constant 0 : i32
    %c0_i32_0 = arith.constant 0 : i32
    %c0_i32_1 = arith.constant 0 : i32
    return %c0_i32, %c0_i32_0 : i32, i32
  }
  func.func @transform_5(%arg0: i32) -> (i32, i32) {
    %c0_i32 = arith.constant 0 : i32
    %c0_i32_0 = arith.constant 0 : i32
    %c0_i32_1 = arith.constant 0 : i32
    return %c0_i32, %c0_i32_0 : i32, i32
  }
  func.func @transform_6(%arg0: i32) -> (i32, i32) {
    %c0_i32 = arith.constant 0 : i32
    %c0_i32_0 = arith.constant 0 : i32
    %c0_i32_1 = arith.constant 0 : i32
    return %c0_i32, %c0_i32_0 : i32, i32
  }
  func.func @transform_7(%arg0: i32) -> (i32, i32) {
    %c0_i32 = arith.constant 0 : i32
    %c0_i32_0 = arith.constant 0 : i32
    %c0_i32_1 = arith.constant 0 : i32
    return %c0_i32, %c0_i32_0 : i32, i32
  }
  func.func @transform_8(%arg0: i32) -> (i32, i32) {
    %c0_i32 = arith.constant 0 : i32
    %c0_i32_0 = arith.constant 0 : i32
    %c0_i32_1 = arith.constant 0 : i32
    return %c0_i32, %c0_i32_0 : i32, i32
  }
  func.func @transform_9(%arg0: i32) -> (i32, i32) {
    %c0_i32 = arith.constant 0 : i32
    %c0_i32_0 = arith.constant 0 : i32
    return %c0_i32, %arg0 : i32, i32
  }
}

</mosaic_0001>

<llo_original>
// kernel: tpu_custom_call.1
$region0: #{tpu_custom_call.1}
  #allocation0 [shape = 'u32[]', space=smem, size = 0x4, offset = 0x4, fixed_abs, tag = 'smem constant byte address 0x4 - core index']
  #allocation1 [shape = 'u32[144,128]{1,0:T(1,128)}', space=vmem, size = 0x12000, scoped, tag = 'internal scratch']
  #allocation2 [shape = 'f32[1,1]{1,0:T(1,128)S(1)}', space=vmem, size = 0x200, scoped, tag = 'scoped memory for tpu_custom_call.1']
  %s0 = inlined_call_operand.vmem [shape: f32[2,128], index: 0, kind: input, shape index: {}]
  %s1 = inlined_call_operand.vmem [shape: f32[32,2], index: 1, kind: input, shape index: {}]
  %s2 = inlined_call_operand.vmem [shape: f32[32,1], index: 2, kind: input, shape index: {}]
  %s3 = inlined_call_operand.vmem [shape: f32[32,32], index: 3, kind: input, shape index: {}]
  %s4 = inlined_call_operand.vmem [shape: f32[32,1], index: 4, kind: input, shape index: {}]
  %s5 = inlined_call_operand.vmem [shape: f32[32,32], index: 5, kind: input, shape index: {}]
  %s6 = inlined_call_operand.vmem [shape: f32[32,1], index: 6, kind: input, shape index: {}]
  %s7 = inlined_call_operand.vmem [shape: f32[1,32], index: 7, kind: input, shape index: {}]
  %s8 = inlined_call_operand.<no memory space> [shape: f32[1,1], index: 8, kind: input, shape index: {}]
  %s9 = inlined_call_operand.hbm [shape: f32[1,128], index: 9, kind: output, shape index: {}]
  %s10 = sld [smem:[#allocation0]]
  $region46: #{tpu_custom_call.1} parent=0
    _
  %s12 = ssub.s32 1, %s10
  %s13 = scalar_select 0, %s12, %s10
  %v14 = vstv %s8
  %15 = vst [vmem:[#allocation2] sm:$0x1] %v14
  $region1: #{tpu_custom_call.1} parent=0
    #allocation3 [shape = 'u8[512]{0}', space=vmem, size = 0x400, scoped, tag = 'output window, operand 0, single buffered']
    #allocation4 [shape = 's32[1]{0}', space=sflag, size = 0x4, scoped, tag = 'scoped memory for tpu_custom_call.1']
    %16 = vsyncpa [#allocation4], 0
    // Predicated region
    $region2: #{tpu_custom_call.1} parent=1 // pred_check
      _
    $region3: #{tpu_custom_call.1} parent=1 // pred_check_branch
      %18 = sbr.rel (0) target = $region5
    $region4: #{tpu_custom_call.1} parent=1 // pred_region
      _
    $region5: #{tpu_custom_call.1} parent=1 // pred_fallthru
      _
    // Predicated region
    $region6: #{tpu_custom_call.1} parent=1 // pred_check
      _
    $region7: #{tpu_custom_call.1} parent=1 // pred_check_branch
      %20 = sbr.rel (0) target = $region9
    $region8: #{tpu_custom_call.1} parent=1 // pred_region
      _
    $region9: #{tpu_custom_call.1} parent=1 // pred_fallthru
      _
    // Predicated region
    $region10: #{tpu_custom_call.1} parent=1 // pred_check
      _
    $region11: #{tpu_custom_call.1} parent=1 // pred_check_branch
      %22 = sbr.rel (0) target = $region13
    $region12: #{tpu_custom_call.1} parent=1 // pred_region
      _
    $region13: #{tpu_custom_call.1} parent=1 // pred_fallthru
      _
    // Predicated region
    $region14: #{tpu_custom_call.1} parent=1 // pred_check
      _
    $region15: #{tpu_custom_call.1} parent=1 // pred_check_branch
      %24 = sbr.rel (0) target = $region17
    $region16: #{tpu_custom_call.1} parent=1 // pred_region
      _
    $region17: #{tpu_custom_call.1} parent=1 // pred_fallthru
      _
    // Predicated region
    $region18: #{tpu_custom_call.1} parent=1 // pred_check
      _
    $region19: #{tpu_custom_call.1} parent=1 // pred_check_branch
      %26 = sbr.rel (0) target = $region21
    $region20: #{tpu_custom_call.1} parent=1 // pred_region
      _
    $region21: #{tpu_custom_call.1} parent=1 // pred_fallthru
      _
    // Predicated region
    $region22: #{tpu_custom_call.1} parent=1 // pred_check
      _
    $region23: #{tpu_custom_call.1} parent=1 // pred_check_branch
      %28 = sbr.rel (0) target = $region25
    $region24: #{tpu_custom_call.1} parent=1 // pred_region
      _
    $region25: #{tpu_custom_call.1} parent=1 // pred_fallthru
      _
    // Predicated region
    $region26: #{tpu_custom_call.1} parent=1 // pred_check
      _
    $region27: #{tpu_custom_call.1} parent=1 // pred_check_branch
      %30 = sbr.rel (0) target = $region29
    $region28: #{tpu_custom_call.1} parent=1 // pred_region
      _
    $region29: #{tpu_custom_call.1} parent=1 // pred_fallthru
      _
    // Predicated region
    $region30: #{tpu_custom_call.1} parent=1 // pred_check
      _
    $region31: #{tpu_custom_call.1} parent=1 // pred_check_branch
      %32 = sbr.rel (0) target = $region33
    $region32: #{tpu_custom_call.1} parent=1 // pred_region
      _
    $region33: #{tpu_custom_call.1} parent=1 // pred_fallthru
      _
    // Predicated region
    $region34: #{tpu_custom_call.1} parent=1 // pred_check
      _
    $region35: #{tpu_custom_call.1} parent=1 // pred_check_branch
      %34 = sbr.rel (0) target = $region37
    $region36: #{tpu_custom_call.1} parent=1 // pred_region
      _
    $region37: #{tpu_custom_call.1} parent=1 // pred_fallthru
      _
    %v35 = vld [vmem:[%s0] sm:$0x3]
    %v36 = vld [vmem:[%s1] sm:$0xff]
    %v37 = vld [vmem:[%s1 + $0x8] sm:$0xff]
    %v38 = vld [vmem:[%s1 + $0x10] sm:$0xff]
    %v39 = vld [vmem:[%s1 + $0x18] sm:$0xff]
    %41 = vset.pattern.permute.xlu0 0
    %42 = vperm.xlu0 %41, %v36
    %v43 = vpop.permute.xlu0 %42
    %46 = vset.pattern.permute.xlu0 0
    %47 = vperm.xlu0 %46, %v37
    %v48 = vpop.permute.xlu0 %47
    %51 = vset.pattern.permute.xlu0 0
    %52 = vperm.xlu0 %51, %v38
    %v53 = vpop.permute.xlu0 %52
    %56 = vset.pattern.permute.xlu0 0
    %57 = vperm.xlu0 %56, %v39
    %v58 = vpop.permute.xlu0 %57
    %v60 = vlaneseq
    %v61 = vshrl.u32 %v60, 7
    %v62 = vsub.s32 0, %v61
    %v63 = vrot.slane %v35, %v62
    %v64 = vmul.f32 %v43, %v63
    %v65 = vmul.f32 %v48, %v63
    %v66 = vmul.f32 %v53, %v63
    %v67 = vmul.f32 %v58, %v63
    %68 = vset.pattern.permute.xlu0 1
    %69 = vperm.xlu0 %68, %v36
    %v70 = vpop.permute.xlu0 %69
    %72 = vset.pattern.permute.xlu0 1
    %73 = vperm.xlu0 %72, %v37
    %v74 = vpop.permute.xlu0 %73
    %76 = vset.pattern.permute.xlu0 1
    %77 = vperm.xlu0 %76, %v38
    %v78 = vpop.permute.xlu0 %77
    %80 = vset.pattern.permute.xlu0 1
    %81 = vperm.xlu0 %80, %v39
    %v82 = vpop.permute.xlu0 %81
    %v84 = vlaneseq
    %v85 = vshrl.u32 %v84, 7
    %v86 = vsub.s32 1, %v85
    %v87 = vrot.slane %v35, %v86
    %v88 = vmul.f32 %v70, %v87
    %v89 = vmul.f32 %v74, %v87
    %v90 = vmul.f32 %v78, %v87
    %v91 = vmul.f32 %v82, %v87
    %v92 = vadd.f32 %v64, %v88
    %v93 = vadd.f32 %v65, %v89
    %v94 = vadd.f32 %v66, %v90
    %v95 = vadd.f32 %v67, %v91
    %v96 = vld [vmem:[%s2] sm:$0xff]
    %v97 = vld [vmem:[%s2 + $0x8] sm:$0xff]
    %v98 = vld [vmem:[%s2 + $0x10] sm:$0xff]
    %v99 = vld [vmem:[%s2 + $0x18] sm:$0xff]
    %101 = vset.pattern.permute.xlu0 0
    %102 = vperm.xlu0 %101, %v96
    %v103 = vpop.permute.xlu0 %102
    %106 = vset.pattern.permute.xlu0 0
    %107 = vperm.xlu0 %106, %v97
    %v108 = vpop.permute.xlu0 %107
    %111 = vset.pattern.permute.xlu0 0
    %112 = vperm.xlu0 %111, %v98
    %v113 = vpop.permute.xlu0 %112
    %116 = vset.pattern.permute.xlu0 0
    %117 = vperm.xlu0 %116, %v99
    %v118 = vpop.permute.xlu0 %117
    %v120 = vadd.f32 %v92, %v103
    %v121 = vadd.f32 %v93, %v108
    %v122 = vadd.f32 %v94, %v113
    %v123 = vadd.f32 %v95, %v118
    %v124 = vtanh.pop %v120
    %v125 = vtanh.pop %v121
    %v126 = vtanh.pop %v122
    %v127 = vtanh.pop %v123
    %v128 = vld [vmem:[%s3] sm:$0xff]
    %v129 = vld [vmem:[%s3 + $0x8] sm:$0xff]
    %v130 = vld [vmem:[%s3 + $0x10] sm:$0xff]
    %v131 = vld [vmem:[%s3 + $0x18] sm:$0xff]
    %v132 = vld [vmem:[%s4] sm:$0xff]
    %v133 = vld [vmem:[%s4 + $0x8] sm:$0xff]
    %v134 = vld [vmem:[%s4 + $0x10] sm:$0xff]
    %v135 = vld [vmem:[%s4 + $0x18] sm:$0xff]
    %137 = vset.pattern.permute.xlu0 0
    %138 = vperm.xlu0 %137, %v132
    %v139 = vpop.permute.xlu0 %138
    %142 = vset.pattern.permute.xlu0 0
    %143 = vperm.xlu0 %142, %v133
    %v144 = vpop.permute.xlu0 %143
    %147 = vset.pattern.permute.xlu0 0
    %148 = vperm.xlu0 %147, %v134
    %v149 = vpop.permute.xlu0 %148
    %152 = vset.pattern.permute.xlu0 0
    %153 = vperm.xlu0 %152, %v135
    %v154 = vpop.permute.xlu0 %153
    %vm156 = vcmask 261120
    %v158 = vsel %vm156, %v128, 0
    %v161 = vsel %vm156, %v129, 0
    %v164 = vsel %vm156, %v130, 0
    %v167 = vsel %vm156, %v131, 0
    %169 = vmatprep.subr.mxu0 0.0
    %170 = vmatpush1.msra.mxu0 0.0
    %171 = vmatprep.subr.mxu0 0.0
    %172 = vmatpush1.msra.mxu0 0.0
    %173 = vmatprep.subr.mxu0 0.0
    %174 = vmatpush1.msra.mxu0 0.0
    %175 = vmatprep.subr.mxu0 0.0
    %176 = vmatpush1.msra.mxu0 0.0
    %177 = vmatprep.subr.mxu0 0.0
    %178 = vmatpush1.msra.mxu0 0.0
    %179 = vmatprep.subr.mxu0 0.0
    %180 = vmatpush1.msra.mxu0 0.0
    %181 = vmatprep.subr.mxu0 0.0
    %182 = vmatpush1.msra.mxu0 0.0
    %183 = vmatprep.subr.mxu0 0.0
    %184 = vmatpush1.msra.mxu0 0.0
    %185 = vmatprep.subr.mxu0 0.0
    %186 = vmatpush1.msra.mxu0 0.0
    %187 = vmatprep.subr.mxu0 0.0
    %188 = vmatpush1.msra.mxu0 0.0
    %189 = vmatprep.subr.mxu0 0.0
    %190 = vmatpush1.msra.mxu0 0.0
    %191 = vmatprep.subr.mxu0 0.0
    %192 = vmatpush1.msra.mxu0 0.0
    %193 = vmatprep.subr.mxu0 0.0
    %v194 = vand.u32 %v127, 4294901760
    %195 = vmatpush1.msra.mxu0 %v194
    %196 = vmatprep.subr.mxu0 0.0
    %v197 = vand.u32 %v126, 4294901760
    %198 = vmatpush1.msra.mxu0 %v197
    %199 = vmatprep.subr.mxu0 0.0
    %v200 = vand.u32 %v125, 4294901760
    %201 = vmatpush1.msra.mxu0 %v200
    %202 = vmatprep.subr.mxu0 0.0
    %v203 = vand.u32 %v124, 4294901760
    %204 = vmatpush1.msra.mxu0 %v203
    %205 = vmatprep.subr.mxu0 0.0
    %206 = vmatpush2.msra.mxu0 0.0
    %207 = vmatprep.subr.mxu0 0.0
    %208 = vmatpush2.msra.mxu0 0.0
    %209 = vmatprep.subr.mxu0 0.0
    %210 = vmatpush2.msra.mxu0 0.0
    %211 = vmatprep.subr.mxu0 0.0
    %212 = vmatpush2.msra.mxu0 0.0
    %213 = vmatprep.subr.mxu0 0.0
    %214 = vmatpush2.msra.mxu0 0.0
    %215 = vmatprep.subr.mxu0 0.0
    %216 = vmatpush2.msra.mxu0 0.0
    %217 = vmatprep.subr.mxu0 0.0
    %218 = vmatpush2.msra.mxu0 0.0
    %219 = vmatprep.subr.mxu0 0.0
    %220 = vmatpush2.msra.mxu0 0.0
    %221 = vmatprep.subr.mxu0 0.0
    %222 = vmatpush2.msra.mxu0 0.0
    %223 = vmatprep.subr.mxu0 0.0
    %224 = vmatpush2.msra.mxu0 0.0
    %225 = vmatprep.subr.mxu0 0.0
    %226 = vmatpush2.msra.mxu0 0.0
    %227 = vmatprep.subr.mxu0 0.0
    %228 = vmatpush2.msra.mxu0 0.0
    %229 = vmatprep.subr.mxu0 0.0
    %230 = vmatpush2.msra.mxu0 0.0
    %231 = vmatprep.subr.mxu0 0.0
    %232 = vmatpush2.msra.mxu0 0.0
    %233 = vmatprep.subr.mxu0 0.0
    %234 = vmatpush2.msra.mxu0 0.0
    %235 = vmatprep.subr.mxu0 0.0
    %236 = vmatpush2.msra.mxu0 0.0
    %237 = vmatprep.mubr.f32.mxu0 0.0
    %v238 = vand.u32 %v158, 4294901760
    %v239 = vsub.f32 %v158, %v238
    %v240 = vand.u32 %v239, 4294901760
    %v241 = vsub.f32 %v239, %v240
    %v242 = vand.u32 %v241, 4294901760
    %243 = vmatmul.mubr.f32.gmra.mxu0 %v242
    %v244 = vpop.f32.mrf.mxu0
    %v245 = vadd.f32 %v139, %v244
    %v246 = vpop.f32.mrf.mxu0
    %247 = vmatprep.mubr.f32.mxu0 0.0
    %v248 = vand.u32 %v161, 4294901760
    %v249 = vsub.f32 %v161, %v248
    %v250 = vand.u32 %v249, 4294901760
    %v251 = vsub.f32 %v249, %v250
    %v252 = vand.u32 %v251, 4294901760
    %253 = vmatmul.mubr.f32.gmra.mxu0 %v252
    %v254 = vpop.f32.mrf.mxu0
    %v255 = vadd.f32 %v144, %v254
    %v256 = vpop.f32.mrf.mxu0
    %257 = vmatprep.mubr.f32.mxu0 0.0
    %v258 = vand.u32 %v164, 4294901760
    %v259 = vsub.f32 %v164, %v258
    %v260 = vand.u32 %v259, 4294901760
    %v261 = vsub.f32 %v259, %v260
    %v262 = vand.u32 %v261, 4294901760
    %263 = vmatmul.mubr.f32.gmra.mxu0 %v262
    %v264 = vpop.f32.mrf.mxu0
    %v265 = vadd.f32 %v149, %v264
    %v266 = vpop.f32.mrf.mxu0
    %267 = vmatprep.mubr.f32.mxu0 0.0
    %v268 = vand.u32 %v167, 4294901760
    %v269 = vsub.f32 %v167, %v268
    %v270 = vand.u32 %v269, 4294901760
    %v271 = vsub.f32 %v269, %v270
    %v272 = vand.u32 %v271, 4294901760
    %273 = vmatmul.mubr.f32.gmra.mxu0 %v272
    %v274 = vpop.f32.mrf.mxu0
    %v275 = vadd.f32 %v154, %v274
    %v276 = vpop.f32.mrf.mxu0
    %277 = vdwg.mxu0
    %278 = vmatprep.subr.mxu0 0.0
    %279 = vmatpush1.msra.mxu0 0.0
    %280 = vmatprep.subr.mxu0 0.0
    %281 = vmatpush1.msra.mxu0 0.0
    %282 = vmatprep.subr.mxu0 0.0
    %283 = vmatpush1.msra.mxu0 0.0
    %284 = vmatprep.subr.mxu0 0.0
    %285 = vmatpush1.msra.mxu0 0.0
    %286 = vmatprep.subr.mxu0 0.0
    %287 = vmatpush1.msra.mxu0 0.0
    %288 = vmatprep.subr.mxu0 0.0
    %289 = vmatpush1.msra.mxu0 0.0
    %290 = vmatprep.subr.mxu0 0.0
    %291 = vmatpush1.msra.mxu0 0.0
    %292 = vmatprep.subr.mxu0 0.0
    %293 = vmatpush1.msra.mxu0 0.0
    %294 = vmatprep.subr.mxu0 0.0
    %295 = vmatpush1.msra.mxu0 0.0
    %296 = vmatprep.subr.mxu0 0.0
    %297 = vmatpush1.msra.mxu0 0.0
    %298 = vmatprep.subr.mxu0 0.0
    %299 = vmatpush1.msra.mxu0 0.0
    %300 = vmatprep.subr.mxu0 0.0
    %301 = vmatpush1.msra.mxu0 0.0
    %302 = vmatprep.subr.mxu0 0.0
    %v303 = vand.u32 %v127, 4294901760
    %v304 = vsub.f32 %v127, %v303
    %v305 = vand.u32 %v304, 4294901760
    %v306 = vsub.f32 %v304, %v305
    %v307 = vand.u32 %v306, 4294901760
    %308 = vmatpush1.msra.mxu0 %v307
    %309 = vmatprep.subr.mxu0 0.0
    %v310 = vand.u32 %v126, 4294901760
    %v311 = vsub.f32 %v126, %v310
    %v312 = vand.u32 %v311, 4294901760
    %v313 = vsub.f32 %v311, %v312
    %v314 = vand.u32 %v313, 4294901760
    %315 = vmatpush1.msra.mxu0 %v314
    %316 = vmatprep.subr.mxu0 0.0
    %v317 = vand.u32 %v125, 4294901760
    %v318 = vsub.f32 %v125, %v317
    %v319 = vand.u32 %v318, 4294901760
    %v320 = vsub.f32 %v318, %v319
    %v321 = vand.u32 %v320, 4294901760
    %322 = vmatpush1.msra.mxu0 %v321
    %323 = vmatprep.subr.mxu0 0.0
    %v324 = vand.u32 %v124, 4294901760
    %v325 = vsub.f32 %v124, %v324
    %v326 = vand.u32 %v325, 4294901760
    %v327 = vsub.f32 %v325, %v326
    %v328 = vand.u32 %v327, 4294901760
    %329 = vmatpush1.msra.mxu0 %v328
    %330 = vmatprep.subr.mxu0 0.0
    %331 = vmatpush2.msra.mxu0 0.0
    %332 = vmatprep.subr.mxu0 0.0
    %333 = vmatpush2.msra.mxu0 0.0
    %334 = vmatprep.subr.mxu0 0.0
    %335 = vmatpush2.msra.mxu0 0.0
    %336 = vmatprep.subr.mxu0 0.0
    %337 = vmatpush2.msra.mxu0 0.0
    %338 = vmatprep.subr.mxu0 0.0
    %339 = vmatpush2.msra.mxu0 0.0
    %340 = vmatprep.subr.mxu0 0.0
    %341 = vmatpush2.msra.mxu0 0.0
    %342 = vmatprep.subr.mxu0 0.0
    %343 = vmatpush2.msra.mxu0 0.0
    %344 = vmatprep.subr.mxu0 0.0
    %345 = vmatpush2.msra.mxu0 0.0
    %346 = vmatprep.subr.mxu0 0.0
    %347 = vmatpush2.msra.mxu0 0.0
    %348 = vmatprep.subr.mxu0 0.0
    %349 = vmatpush2.msra.mxu0 0.0
    %350 = vmatprep.subr.mxu0 0.0
    %351 = vmatpush2.msra.mxu0 0.0
    %352 = vmatprep.subr.mxu0 0.0
    %353 = vmatpush2.msra.mxu0 0.0
    %354 = vmatprep.subr.mxu0 0.0
    %355 = vmatpush2.msra.mxu0 0.0
    %356 = vmatprep.subr.mxu0 0.0
    %357 = vmatpush2.msra.mxu0 0.0
    %358 = vmatprep.subr.mxu0 0.0
    %359 = vmatpush2.msra.mxu0 0.0
    %360 = vmatprep.subr.mxu0 0.0
    %361 = vmatpush2.msra.mxu0 0.0
    %362 = vmatprep.mubr.f32.mxu0 0.0
    %v363 = vand.u32 %v158, 4294901760
    %364 = vmatmul.mubr.f32.gmra.mxu0 %v363
    %v365 = vpop.f32.mrf.mxu0
    %v366 = vadd.f32 %v245, %v365
    %v367 = vpop.f32.mrf.mxu0
    %368 = vmatprep.mubr.f32.mxu0 0.0
    %v369 = vand.u32 %v161, 4294901760
    %370 = vmatmul.mubr.f32.gmra.mxu0 %v369
    %v371 = vpop.f32.mrf.mxu0
    %v372 = vadd.f32 %v255, %v371
    %v373 = vpop.f32.mrf.mxu0
    %374 = vmatprep.mubr.f32.mxu0 0.0
    %v375 = vand.u32 %v164, 4294901760
    %376 = vmatmul.mubr.f32.gmra.mxu0 %v375
    %v377 = vpop.f32.mrf.mxu0
    %v378 = vadd.f32 %v265, %v377
    %v379 = vpop.f32.mrf.mxu0
    %380 = vmatprep.mubr.f32.mxu0 0.0
    %v381 = vand.u32 %v167, 4294901760
    %382 = vmatmul.mubr.f32.gmra.mxu0 %v381
    %v383 = vpop.f32.mrf.mxu0
    %v384 = vadd.f32 %v275, %v383
    %v385 = vpop.f32.mrf.mxu0
    %386 = vdwg.mxu0
    %387 = vmatprep.subr.mxu0 0.0
    %388 = vmatpush1.msra.mxu0 0.0
    %389 = vmatprep.subr.mxu0 0.0
    %390 = vmatpush1.msra.mxu0 0.0
    %391 = vmatprep.subr.mxu0 0.0
    %392 = vmatpush1.msra.mxu0 0.0
    %393 = vmatprep.subr.mxu0 0.0
    %394 = vmatpush1.msra.mxu0 0.0
    %395 = vmatprep.subr.mxu0 0.0
    %396 = vmatpush1.msra.mxu0 0.0
    %397 = vmatprep.subr.mxu0 0.0
    %398 = vmatpush1.msra.mxu0 0.0
    %399 = vmatprep.subr.mxu0 0.0
    %400 = vmatpush1.msra.mxu0 0.0
    %401 = vmatprep.subr.mxu0 0.0
    %402 = vmatpush1.msra.mxu0 0.0
    %403 = vmatprep.subr.mxu0 0.0
    %404 = vmatpush1.msra.mxu0 0.0
    %405 = vmatprep.subr.mxu0 0.0
    %406 = vmatpush1.msra.mxu0 0.0
    %407 = vmatprep.subr.mxu0 0.0
    %408 = vmatpush1.msra.mxu0 0.0
    %409 = vmatprep.subr.mxu0 0.0
    %410 = vmatpush1.msra.mxu0 0.0
    %411 = vmatprep.subr.mxu0 0.0
    %v412 = vand.u32 %v127, 4294901760
    %v413 = vsub.f32 %v127, %v412
    %414 = vmatpush1.msra.mxu0 %v413
    %415 = vmatprep.subr.mxu0 0.0
    %v416 = vand.u32 %v126, 4294901760
    %v417 = vsub.f32 %v126, %v416
    %418 = vmatpush1.msra.mxu0 %v417
    %419 = vmatprep.subr.mxu0 0.0
    %v420 = vand.u32 %v125, 4294901760
    %v421 = vsub.f32 %v125, %v420
    %422 = vmatpush1.msra.mxu0 %v421
    %423 = vmatprep.subr.mxu0 0.0
    %v424 = vand.u32 %v124, 4294901760
    %v425 = vsub.f32 %v124, %v424
    %426 = vmatpush1.msra.mxu0 %v425
    %427 = vmatprep.subr.mxu0 0.0
    %428 = vmatpush2.msra.mxu0 0.0
    %429 = vmatprep.subr.mxu0 0.0
    %430 = vmatpush2.msra.mxu0 0.0
    %431 = vmatprep.subr.mxu0 0.0
    %432 = vmatpush2.msra.mxu0 0.0
    %433 = vmatprep.subr.mxu0 0.0
    %434 = vmatpush2.msra.mxu0 0.0
    %435 = vmatprep.subr.mxu0 0.0
    %436 = vmatpush2.msra.mxu0 0.0
    %437 = vmatprep.subr.mxu0 0.0
    %438 = vmatpush2.msra.mxu0 0.0
    %439 = vmatprep.subr.mxu0 0.0
    %440 = vmatpush2.msra.mxu0 0.0
    %441 = vmatprep.subr.mxu0 0.0
    %442 = vmatpush2.msra.mxu0 0.0
    %443 = vmatprep.subr.mxu0 0.0
    %444 = vmatpush2.msra.mxu0 0.0
    %445 = vmatprep.subr.mxu0 0.0
    %446 = vmatpush2.msra.mxu0 0.0
    %447 = vmatprep.subr.mxu0 0.0
    %448 = vmatpush2.msra.mxu0 0.0
    %449 = vmatprep.subr.mxu0 0.0
    %450 = vmatpush2.msra.mxu0 0.0
    %451 = vmatprep.subr.mxu0 0.0
    %452 = vmatpush2.msra.mxu0 0.0
    %453 = vmatprep.subr.mxu0 0.0
    %454 = vmatpush2.msra.mxu0 0.0
    %455 = vmatprep.subr.mxu0 0.0
    %456 = vmatpush2.msra.mxu0 0.0
    %457 = vmatprep.subr.mxu0 0.0
    %458 = vmatpush2.msra.mxu0 0.0
    %459 = vmatprep.mubr.f32.mxu0 0.0
    %v460 = vand.u32 %v158, 4294901760
    %v461 = vsub.f32 %v158, %v460
    %462 = vmatmul.mubr.f32.gmra.mxu0 %v461
    %v463 = vpop.f32.mrf.mxu0
    %v464 = vadd.f32 %v366, %v463
    %v465 = vpop.f32.mrf.mxu0
    %466 = vmatprep.mubr.f32.mxu0 0.0
    %v467 = vand.u32 %v161, 4294901760
    %v468 = vsub.f32 %v161, %v467
    %469 = vmatmul.mubr.f32.gmra.mxu0 %v468
    %v470 = vpop.f32.mrf.mxu0
    %v471 = vadd.f32 %v372, %v470
    %v472 = vpop.f32.mrf.mxu0
    %473 = vmatprep.mubr.f32.mxu0 0.0
    %v474 = vand.u32 %v164, 4294901760
    %v475 = vsub.f32 %v164, %v474
    %476 = vmatmul.mubr.f32.gmra.mxu0 %v475
    %v477 = vpop.f32.mrf.mxu0
    %v478 = vadd.f32 %v378, %v477
    %v479 = vpop.f32.mrf.mxu0
    %480 = vmatprep.mubr.f32.mxu0 0.0
    %v481 = vand.u32 %v167, 4294901760
    %v482 = vsub.f32 %v167, %v481
    %483 = vmatmul.mubr.f32.gmra.mxu0 %v482
    %v484 = vpop.f32.mrf.mxu0
    %v485 = vadd.f32 %v384, %v484
    %v486 = vpop.f32.mrf.mxu0
    %487 = vdwg.mxu0
    %488 = vmatprep.subr.mxu0 0.0
    %489 = vmatpush1.msra.mxu0 0.0
    %490 = vmatprep.subr.mxu0 0.0
    %491 = vmatpush1.msra.mxu0 0.0
    %492 = vmatprep.subr.mxu0 0.0
    %493 = vmatpush1.msra.mxu0 0.0
    %494 = vmatprep.subr.mxu0 0.0
    %495 = vmatpush1.msra.mxu0 0.0
    %496 = vmatprep.subr.mxu0 0.0
    %497 = vmatpush1.msra.mxu0 0.0
    %498 = vmatprep.subr.mxu0 0.0
    %499 = vmatpush1.msra.mxu0 0.0
    %500 = vmatprep.subr.mxu0 0.0
    %501 = vmatpush1.msra.mxu0 0.0
    %502 = vmatprep.subr.mxu0 0.0
    %503 = vmatpush1.msra.mxu0 0.0
    %504 = vmatprep.subr.mxu0 0.0
    %505 = vmatpush1.msra.mxu0 0.0
    %506 = vmatprep.subr.mxu0 0.0
    %507 = vmatpush1.msra.mxu0 0.0
    %508 = vmatprep.subr.mxu0 0.0
    %509 = vmatpush1.msra.mxu0 0.0
    %510 = vmatprep.subr.mxu0 0.0
    %511 = vmatpush1.msra.mxu0 0.0
    %512 = vmatprep.subr.mxu0 0.0
    %v513 = vand.u32 %v127, 4294901760
    %514 = vmatpush1.msra.mxu0 %v513
    %515 = vmatprep.subr.mxu0 0.0
    %v516 = vand.u32 %v126, 4294901760
    %517 = vmatpush1.msra.mxu0 %v516
    %518 = vmatprep.subr.mxu0 0.0
    %v519 = vand.u32 %v125, 4294901760
    %520 = vmatpush1.msra.mxu0 %v519
    %521 = vmatprep.subr.mxu0 0.0
    %v522 = vand.u32 %v124, 4294901760
    %523 = vmatpush1.msra.mxu0 %v522
    %524 = vmatprep.subr.mxu0 0.0
    %525 = vmatpush2.msra.mxu0 0.0
    %526 = vmatprep.subr.mxu0 0.0
    %527 = vmatpush2.msra.mxu0 0.0
    %528 = vmatprep.subr.mxu0 0.0
    %529 = vmatpush2.msra.mxu0 0.0
    %530 = vmatprep.subr.mxu0 0.0
    %531 = vmatpush2.msra.mxu0 0.0
    %532 = vmatprep.subr.mxu0 0.0
    %533 = vmatpush2.msra.mxu0 0.0
    %534 = vmatprep.subr.mxu0 0.0
    %535 = vmatpush2.msra.mxu0 0.0
    %536 = vmatprep.subr.mxu0 0.0
    %537 = vmatpush2.msra.mxu0 0.0
    %538 = vmatprep.subr.mxu0 0.0
    %539 = vmatpush2.msra.mxu0 0.0
    %540 = vmatprep.subr.mxu0 0.0
    %541 = vmatpush2.msra.mxu0 0.0
    %542 = vmatprep.subr.mxu0 0.0
    %543 = vmatpush2.msra.mxu0 0.0
    %544 = vmatprep.subr.mxu0 0.0
    %545 = vmatpush2.msra.mxu0 0.0
    %546 = vmatprep.subr.mxu0 0.0
    %547 = vmatpush2.msra.mxu0 0.0
    %548 = vmatprep.subr.mxu0 0.0
    %549 = vmatpush2.msra.mxu0 0.0
    %550 = vmatprep.subr.mxu0 0.0
    %551 = vmatpush2.msra.mxu0 0.0
    %552 = vmatprep.subr.mxu0 0.0
    %553 = vmatpush2.msra.mxu0 0.0
    %554 = vmatprep.subr.mxu0 0.0
    %555 = vmatpush2.msra.mxu0 0.0
    %556 = vmatprep.mubr.f32.mxu0 0.0
    %v557 = vand.u32 %v158, 4294901760
    %v558 = vsub.f32 %v158, %v557
    %v559 = vand.u32 %v558, 4294901760
    %560 = vmatmul.mubr.f32.gmra.mxu0 %v559
    %v561 = vpop.f32.mrf.mxu0
    %v562 = vadd.f32 %v464, %v561
    %v563 = vpop.f32.mrf.mxu0
    %564 = vmatprep.mubr.f32.mxu0 0.0
    %v565 = vand.u32 %v161, 4294901760
    %v566 = vsub.f32 %v161, %v565
    %v567 = vand.u32 %v566, 4294901760
    %568 = vmatmul.mubr.f32.gmra.mxu0 %v567
    %v569 = vpop.f32.mrf.mxu0
    %v570 = vadd.f32 %v471, %v569
    %v571 = vpop.f32.mrf.mxu0
    %572 = vmatprep.mubr.f32.mxu0 0.0
    %v573 = vand.u32 %v164, 4294901760
    %v574 = vsub.f32 %v164, %v573
    %v575 = vand.u32 %v574, 4294901760
    %576 = vmatmul.mubr.f32.gmra.mxu0 %v575
    %v577 = vpop.f32.mrf.mxu0
    %v578 = vadd.f32 %v478, %v577
    %v579 = vpop.f32.mrf.mxu0
    %580 = vmatprep.mubr.f32.mxu0 0.0
    %v581 = vand.u32 %v167, 4294901760
    %v582 = vsub.f32 %v167, %v581
    %v583 = vand.u32 %v582, 4294901760
    %584 = vmatmul.mubr.f32.gmra.mxu0 %v583
    %v585 = vpop.f32.mrf.mxu0
    %v586 = vadd.f32 %v485, %v585
    %v587 = vpop.f32.mrf.mxu0
    %588 = vdwg.mxu0
    %589 = vmatprep.subr.mxu0 0.0
    %590 = vmatpush1.msra.mxu0 0.0
    %591 = vmatprep.subr.mxu0 0.0
    %592 = vmatpush1.msra.mxu0 0.0
    %593 = vmatprep.subr.mxu0 0.0
    %594 = vmatpush1.msra.mxu0 0.0
    %595 = vmatprep.subr.mxu0 0.0
    %596 = vmatpush1.msra.mxu0 0.0
    %597 = vmatprep.subr.mxu0 0.0
    %598 = vmatpush1.msra.mxu0 0.0
    %599 = vmatprep.subr.mxu0 0.0
    %600 = vmatpush1.msra.mxu0 0.0
    %601 = vmatprep.subr.mxu0 0.0
    %602 = vmatpush1.msra.mxu0 0.0
    %603 = vmatprep.subr.mxu0 0.0
    %604 = vmatpush1.msra.mxu0 0.0
    %605 = vmatprep.subr.mxu0 0.0
    %606 = vmatpush1.msra.mxu0 0.0
    %607 = vmatprep.subr.mxu0 0.0
    %608 = vmatpush1.msra.mxu0 0.0
    %609 = vmatprep.subr.mxu0 0.0
    %610 = vmatpush1.msra.mxu0 0.0
    %611 = vmatprep.subr.mxu0 0.0
    %612 = vmatpush1.msra.mxu0 0.0
    %613 = vmatprep.subr.mxu0 0.0
    %v614 = vand.u32 %v127, 4294901760
    %v615 = vsub.f32 %v127, %v614
    %v616 = vand.u32 %v615, 4294901760
    %617 = vmatpush1.msra.mxu0 %v616
    %618 = vmatprep.subr.mxu0 0.0
    %v619 = vand.u32 %v126, 4294901760
    %v620 = vsub.f32 %v126, %v619
    %v621 = vand.u32 %v620, 4294901760
    %622 = vmatpush1.msra.mxu0 %v621
    %623 = vmatprep.subr.mxu0 0.0
    %v624 = vand.u32 %v125, 4294901760
    %v625 = vsub.f32 %v125, %v624
    %v626 = vand.u32 %v625, 4294901760
    %627 = vmatpush1.msra.mxu0 %v626
    %628 = vmatprep.subr.mxu0 0.0
    %v629 = vand.u32 %v124, 4294901760
    %v630 = vsub.f32 %v124, %v629
    %v631 = vand.u32 %v630, 4294901760
    %632 = vmatpush1.msra.mxu0 %v631
    %633 = vmatprep.subr.mxu0 0.0
    %634 = vmatpush2.msra.mxu0 0.0
    %635 = vmatprep.subr.mxu0 0.0
    %636 = vmatpush2.msra.mxu0 0.0
    %637 = vmatprep.subr.mxu0 0.0
    %638 = vmatpush2.msra.mxu0 0.0
    %639 = vmatprep.subr.mxu0 0.0
    %640 = vmatpush2.msra.mxu0 0.0
    %641 = vmatprep.subr.mxu0 0.0
    %642 = vmatpush2.msra.mxu0 0.0
    %643 = vmatprep.subr.mxu0 0.0
    %644 = vmatpush2.msra.mxu0 0.0
    %645 = vmatprep.subr.mxu0 0.0
    %646 = vmatpush2.msra.mxu0 0.0
    %647 = vmatprep.subr.mxu0 0.0
    %648 = vmatpush2.msra.mxu0 0.0
    %649 = vmatprep.subr.mxu0 0.0
    %650 = vmatpush2.msra.mxu0 0.0
    %651 = vmatprep.subr.mxu0 0.0
    %652 = vmatpush2.msra.mxu0 0.0
    %653 = vmatprep.subr.mxu0 0.0
    %654 = vmatpush2.msra.mxu0 0.0
    %655 = vmatprep.subr.mxu0 0.0
    %656 = vmatpush2.msra.mxu0 0.0
    %657 = vmatprep.subr.mxu0 0.0
    %658 = vmatpush2.msra.mxu0 0.0
    %659 = vmatprep.subr.mxu0 0.0
    %660 = vmatpush2.msra.mxu0 0.0
    %661 = vmatprep.subr.mxu0 0.0
    %662 = vmatpush2.msra.mxu0 0.0
    %663 = vmatprep.subr.mxu0 0.0
    %664 = vmatpush2.msra.mxu0 0.0
    %665 = vmatprep.mubr.f32.mxu0 0.0
    %v666 = vand.u32 %v158, 4294901760
    %667 = vmatmul.mubr.f32.gmra.mxu0 %v666
    %v668 = vpop.f32.mrf.mxu0
    %v669 = vadd.f32 %v562, %v668
    %v670 = vpop.f32.mrf.mxu0
    %671 = vmatprep.mubr.f32.mxu0 0.0
    %v672 = vand.u32 %v161, 4294901760
    %673 = vmatmul.mubr.f32.gmra.mxu0 %v672
    %v674 = vpop.f32.mrf.mxu0
    %v675 = vadd.f32 %v570, %v674
    %v676 = vpop.f32.mrf.mxu0
    %677 = vmatprep.mubr.f32.mxu0 0.0
    %v678 = vand.u32 %v164, 4294901760
    %679 = vmatmul.mubr.f32.gmra.mxu0 %v678
    %v680 = vpop.f32.mrf.mxu0
    %v681 = vadd.f32 %v578, %v680
    %v682 = vpop.f32.mrf.mxu0
    %683 = vmatprep.mubr.f32.mxu0 0.0
    %v684 = vand.u32 %v167, 4294901760
    %685 = vmatmul.mubr.f32.gmra.mxu0 %v684
    %v686 = vpop.f32.mrf.mxu0
    %v687 = vadd.f32 %v586, %v686
    %v688 = vpop.f32.mrf.mxu0
    %689 = vdwg.mxu0
    %690 = vmatprep.subr.mxu0 0.0
    %691 = vmatpush1.msra.mxu0 0.0
    %692 = vmatprep.subr.mxu0 0.0
    %693 = vmatpush1.msra.mxu0 0.0
    %694 = vmatprep.subr.mxu0 0.0
    %695 = vmatpush1.msra.mxu0 0.0
    %696 = vmatprep.subr.mxu0 0.0
    %697 = vmatpush1.msra.mxu0 0.0
    %698 = vmatprep.subr.mxu0 0.0
    %699 = vmatpush1.msra.mxu0 0.0
    %700 = vmatprep.subr.mxu0 0.0
    %701 = vmatpush1.msra.mxu0 0.0
    %702 = vmatprep.subr.mxu0 0.0
    %703 = vmatpush1.msra.mxu0 0.0
    %704 = vmatprep.subr.mxu0 0.0
    %705 = vmatpush1.msra.mxu0 0.0
    %706 = vmatprep.subr.mxu0 0.0
    %707 = vmatpush1.msra.mxu0 0.0
    %708 = vmatprep.subr.mxu0 0.0
    %709 = vmatpush1.msra.mxu0 0.0
    %710 = vmatprep.subr.mxu0 0.0
    %711 = vmatpush1.msra.mxu0 0.0
    %712 = vmatprep.subr.mxu0 0.0
    %713 = vmatpush1.msra.mxu0 0.0
    %714 = vmatprep.subr.mxu0 0.0
    %v715 = vand.u32 %v127, 4294901760
    %716 = vmatpush1.msra.mxu0 %v715
    %717 = vmatprep.subr.mxu0 0.0
    %v718 = vand.u32 %v126, 4294901760
    %719 = vmatpush1.msra.mxu0 %v718
    %720 = vmatprep.subr.mxu0 0.0
    %v721 = vand.u32 %v125, 4294901760
    %722 = vmatpush1.msra.mxu0 %v721
    %723 = vmatprep.subr.mxu0 0.0
    %v724 = vand.u32 %v124, 4294901760
    %725 = vmatpush1.msra.mxu0 %v724
    %726 = vmatprep.subr.mxu0 0.0
    %727 = vmatpush2.msra.mxu0 0.0
    %728 = vmatprep.subr.mxu0 0.0
    %729 = vmatpush2.msra.mxu0 0.0
    %730 = vmatprep.subr.mxu0 0.0
    %731 = vmatpush2.msra.mxu0 0.0
    %732 = vmatprep.subr.mxu0 0.0
    %733 = vmatpush2.msra.mxu0 0.0
    %734 = vmatprep.subr.mxu0 0.0
    %735 = vmatpush2.msra.mxu0 0.0
    %736 = vmatprep.subr.mxu0 0.0
    %737 = vmatpush2.msra.mxu0 0.0
    %738 = vmatprep.subr.mxu0 0.0
    %739 = vmatpush2.msra.mxu0 0.0
    %740 = vmatprep.subr.mxu0 0.0
    %741 = vmatpush2.msra.mxu0 0.0
    %742 = vmatprep.subr.mxu0 0.0
    %743 = vmatpush2.msra.mxu0 0.0
    %744 = vmatprep.subr.mxu0 0.0
    %745 = vmatpush2.msra.mxu0 0.0
    %746 = vmatprep.subr.mxu0 0.0
    %747 = vmatpush2.msra.mxu0 0.0
    %748 = vmatprep.subr.mxu0 0.0
    %749 = vmatpush2.msra.mxu0 0.0
    %750 = vmatprep.subr.mxu0 0.0
    %751 = vmatpush2.msra.mxu0 0.0
    %752 = vmatprep.subr.mxu0 0.0
    %753 = vmatpush2.msra.mxu0 0.0
    %754 = vmatprep.subr.mxu0 0.0
    %755 = vmatpush2.msra.mxu0 0.0
    %756 = vmatprep.subr.mxu0 0.0
    %757 = vmatpush2.msra.mxu0 0.0
    %758 = vmatprep.mubr.f32.mxu0 0.0
    %v759 = vand.u32 %v158, 4294901760
    %760 = vmatmul.mubr.f32.gmra.mxu0 %v759
    %v761 = vpop.f32.mrf.mxu0
    %v762 = vadd.f32 %v669, %v761
    %v763 = vpop.f32.mrf.mxu0
    %764 = vmatprep.mubr.f32.mxu0 0.0
    %v765 = vand.u32 %v161, 4294901760
    %766 = vmatmul.mubr.f32.gmra.mxu0 %v765
    %v767 = vpop.f32.mrf.mxu0
    %v768 = vadd.f32 %v675, %v767
    %v769 = vpop.f32.mrf.mxu0
    %770 = vmatprep.mubr.f32.mxu0 0.0
    %v771 = vand.u32 %v164, 4294901760
    %772 = vmatmul.mubr.f32.gmra.mxu0 %v771
    %v773 = vpop.f32.mrf.mxu0
    %v774 = vadd.f32 %v681, %v773
    %v775 = vpop.f32.mrf.mxu0
    %776 = vmatprep.mubr.f32.mxu0 0.0
    %v777 = vand.u32 %v167, 4294901760
    %778 = vmatmul.mubr.f32.gmra.mxu0 %v777
    %v779 = vpop.f32.mrf.mxu0
    %v780 = vadd.f32 %v687, %v779
    %v781 = vpop.f32.mrf.mxu0
    %782 = vdwg.mxu0
    %v783 = vtanh.pop %v762
    %v784 = vtanh.pop %v768
    %v785 = vtanh.pop %v774
    %v786 = vtanh.pop %v780
    %v787 = vld [vmem:[%s5] sm:$0xff]
    %v788 = vld [vmem:[%s5 + $0x8] sm:$0xff]
    %v789 = vld [vmem:[%s5 + $0x10] sm:$0xff]
    %v790 = vld [vmem:[%s5 + $0x18] sm:$0xff]
    %v791 = vld [vmem:[%s6] sm:$0xff]
    %v792 = vld [vmem:[%s6 + $0x8] sm:$0xff]
    %v793 = vld [vmem:[%s6 + $0x10] sm:$0xff]
    %v794 = vld [vmem:[%s6 + $0x18] sm:$0xff]
    %796 = vset.pattern.permute.xlu0 0
    %797 = vperm.xlu0 %796, %v791
    %v798 = vpop.permute.xlu0 %797
    %801 = vset.pattern.permute.xlu0 0
    %802 = vperm.xlu0 %801, %v792
    %v803 = vpop.permute.xlu0 %802
    %806 = vset.pattern.permute.xlu0 0
    %807 = vperm.xlu0 %806, %v793
    %v808 = vpop.permute.xlu0 %807
    %811 = vset.pattern.permute.xlu0 0
    %812 = vperm.xlu0 %811, %v794
    %v813 = vpop.permute.xlu0 %812
    %v816 = vsel %vm156, %v787, 0
    %v819 = vsel %vm156, %v788, 0
    %v822 = vsel %vm156, %v789, 0
    %v825 = vsel %vm156, %v790, 0
    %827 = vmatprep.subr.mxu0 0.0
    %828 = vmatpush1.msra.mxu0 0.0
    %829 = vmatprep.subr.mxu0 0.0
    %830 = vmatpush1.msra.mxu0 0.0
    %831 = vmatprep.subr.mxu0 0.0
    %832 = vmatpush1.msra.mxu0 0.0
    %833 = vmatprep.subr.mxu0 0.0
    %834 = vmatpush1.msra.mxu0 0.0
    %835 = vmatprep.subr.mxu0 0.0
    %836 = vmatpush1.msra.mxu0 0.0
    %837 = vmatprep.subr.mxu0 0.0
    %838 = vmatpush1.msra.mxu0 0.0
    %839 = vmatprep.subr.mxu0 0.0
    %840 = vmatpush1.msra.mxu0 0.0
    %841 = vmatprep.subr.mxu0 0.0
    %842 = vmatpush1.msra.mxu0 0.0
    %843 = vmatprep.subr.mxu0 0.0
    %844 = vmatpush1.msra.mxu0 0.0
    %845 = vmatprep.subr.mxu0 0.0
    %846 = vmatpush1.msra.mxu0 0.0
    %847 = vmatprep.subr.mxu0 0.0
    %848 = vmatpush1.msra.mxu0 0.0
    %849 = vmatprep.subr.mxu0 0.0
    %850 = vmatpush1.msra.mxu0 0.0
    %851 = vmatprep.subr.mxu0 0.0
    %v852 = vand.u32 %v786, 4294901760
    %853 = vmatpush1.msra.mxu0 %v852
    %854 = vmatprep.subr.mxu0 0.0
    %v855 = vand.u32 %v785, 4294901760
    %856 = vmatpush1.msra.mxu0 %v855
    %857 = vmatprep.subr.mxu0 0.0
    %v858 = vand.u32 %v784, 4294901760
    %859 = vmatpush1.msra.mxu0 %v858
    %860 = vmatprep.subr.mxu0 0.0
    %v861 = vand.u32 %v783, 4294901760
    %862 = vmatpush1.msra.mxu0 %v861
    %863 = vmatprep.subr.mxu0 0.0
    %864 = vmatpush2.msra.mxu0 0.0
    %865 = vmatprep.subr.mxu0 0.0
    %866 = vmatpush2.msra.mxu0 0.0
    %867 = vmatprep.subr.mxu0 0.0
    %868 = vmatpush2.msra.mxu0 0.0
    %869 = vmatprep.subr.mxu0 0.0
    %870 = vmatpush2.msra.mxu0 0.0
    %871 = vmatprep.subr.mxu0 0.0
    %872 = vmatpush2.msra.mxu0 0.0
    %873 = vmatprep.subr.mxu0 0.0
    %874 = vmatpush2.msra.mxu0 0.0
    %875 = vmatprep.subr.mxu0 0.0
    %876 = vmatpush2.msra.mxu0 0.0
    %877 = vmatprep.subr.mxu0 0.0
    %878 = vmatpush2.msra.mxu0 0.0
    %879 = vmatprep.subr.mxu0 0.0
    %880 = vmatpush2.msra.mxu0 0.0
    %881 = vmatprep.subr.mxu0 0.0
    %882 = vmatpush2.msra.mxu0 0.0
    %883 = vmatprep.subr.mxu0 0.0
    %884 = vmatpush2.msra.mxu0 0.0
    %885 = vmatprep.subr.mxu0 0.0
    %886 = vmatpush2.msra.mxu0 0.0
    %887 = vmatprep.subr.mxu0 0.0
    %888 = vmatpush2.msra.mxu0 0.0
    %889 = vmatprep.subr.mxu0 0.0
    %890 = vmatpush2.msra.mxu0 0.0
    %891 = vmatprep.subr.mxu0 0.0
    %892 = vmatpush2.msra.mxu0 0.0
    %893 = vmatprep.subr.mxu0 0.0
    %894 = vmatpush2.msra.mxu0 0.0
    %895 = vmatprep.mubr.f32.mxu0 0.0
    %v896 = vand.u32 %v816, 4294901760
    %v897 = vsub.f32 %v816, %v896
    %v898 = vand.u32 %v897, 4294901760
    %v899 = vsub.f32 %v897, %v898
    %v900 = vand.u32 %v899, 4294901760
    %901 = vmatmul.mubr.f32.gmra.mxu0 %v900
    %v902 = vpop.f32.mrf.mxu0
    %v903 = vadd.f32 %v798, %v902
    %v904 = vpop.f32.mrf.mxu0
    %905 = vmatprep.mubr.f32.mxu0 0.0
    %v906 = vand.u32 %v819, 4294901760
    %v907 = vsub.f32 %v819, %v906
    %v908 = vand.u32 %v907, 4294901760
    %v909 = vsub.f32 %v907, %v908
    %v910 = vand.u32 %v909, 4294901760
    %911 = vmatmul.mubr.f32.gmra.mxu0 %v910
    %v912 = vpop.f32.mrf.mxu0
    %v913 = vadd.f32 %v803, %v912
    %v914 = vpop.f32.mrf.mxu0
    %915 = vmatprep.mubr.f32.mxu0 0.0
    %v916 = vand.u32 %v822, 4294901760
    %v917 = vsub.f32 %v822, %v916
    %v918 = vand.u32 %v917, 4294901760
    %v919 = vsub.f32 %v917, %v918
    %v920 = vand.u32 %v919, 4294901760
    %921 = vmatmul.mubr.f32.gmra.mxu0 %v920
    %v922 = vpop.f32.mrf.mxu0
    %v923 = vadd.f32 %v808, %v922
    %v924 = vpop.f32.mrf.mxu0
    %925 = vmatprep.mubr.f32.mxu0 0.0
    %v926 = vand.u32 %v825, 4294901760
    %v927 = vsub.f32 %v825, %v926
    %v928 = vand.u32 %v927, 4294901760
    %v929 = vsub.f32 %v927, %v928
    %v930 = vand.u32 %v929, 4294901760
    %931 = vmatmul.mubr.f32.gmra.mxu0 %v930
    %v932 = vpop.f32.mrf.mxu0
    %v933 = vadd.f32 %v813, %v932
    %v934 = vpop.f32.mrf.mxu0
    %935 = vdwg.mxu0
    %936 = vmatprep.subr.mxu0 0.0
    %937 = vmatpush1.msra.mxu0 0.0
    %938 = vmatprep.subr.mxu0 0.0
    %939 = vmatpush1.msra.mxu0 0.0
    %940 = vmatprep.subr.mxu0 0.0
    %941 = vmatpush1.msra.mxu0 0.0
    %942 = vmatprep.subr.mxu0 0.0
    %943 = vmatpush1.msra.mxu0 0.0
    %944 = vmatprep.subr.mxu0 0.0
    %945 = vmatpush1.msra.mxu0 0.0
    %946 = vmatprep.subr.mxu0 0.0
    %947 = vmatpush1.msra.mxu0 0.0
    %948 = vmatprep.subr.mxu0 0.0
    %949 = vmatpush1.msra.mxu0 0.0
    %950 = vmatprep.subr.mxu0 0.0
    %951 = vmatpush1.msra.mxu0 0.0
    %952 = vmatprep.subr.mxu0 0.0
    %953 = vmatpush1.msra.mxu0 0.0
    %954 = vmatprep.subr.mxu0 0.0
    %955 = vmatpush1.msra.mxu0 0.0
    %956 = vmatprep.subr.mxu0 0.0
    %957 = vmatpush1.msra.mxu0 0.0
    %958 = vmatprep.subr.mxu0 0.0
    %959 = vmatpush1.msra.mxu0 0.0
    %960 = vmatprep.subr.mxu0 0.0
    %v961 = vand.u32 %v786, 4294901760
    %v962 = vsub.f32 %v786, %v961
    %v963 = vand.u32 %v962, 4294901760
    %v964 = vsub.f32 %v962, %v963
    %v965 = vand.u32 %v964, 4294901760
    %966 = vmatpush1.msra.mxu0 %v965
    %967 = vmatprep.subr.mxu0 0.0
    %v968 = vand.u32 %v785, 4294901760
    %v969 = vsub.f32 %v785, %v968
    %v970 = vand.u32 %v969, 4294901760
    %v971 = vsub.f32 %v969, %v970
    %v972 = vand.u32 %v971, 4294901760
    %973 = vmatpush1.msra.mxu0 %v972
    %974 = vmatprep.subr.mxu0 0.0
    %v975 = vand.u32 %v784, 4294901760
    %v976 = vsub.f32 %v784, %v975
    %v977 = vand.u32 %v976, 4294901760
    %v978 = vsub.f32 %v976, %v977
    %v979 = vand.u32 %v978, 4294901760
    %980 = vmatpush1.msra.mxu0 %v979
    %981 = vmatprep.subr.mxu0 0.0
    %v982 = vand.u32 %v783, 4294901760
    %v983 = vsub.f32 %v783, %v982
    %v984 = vand.u32 %v983, 4294901760
    %v985 = vsub.f32 %v983, %v984
    %v986 = vand.u32 %v985, 4294901760
    %987 = vmatpush1.msra.mxu0 %v986
    %988 = vmatprep.subr.mxu0 0.0
    %989 = vmatpush2.msra.mxu0 0.0
    %990 = vmatprep.subr.mxu0 0.0
    %991 = vmatpush2.msra.mxu0 0.0
    %992 = vmatprep.subr.mxu0 0.0
    %993 = vmatpush2.msra.mxu0 0.0
    %994 = vmatprep.subr.mxu0 0.0
    %995 = vmatpush2.msra.mxu0 0.0
    %996 = vmatprep.subr.mxu0 0.0
    %997 = vmatpush2.msra.mxu0 0.0
    %998 = vmatprep.subr.mxu0 0.0
    %999 = vmatpush2.msra.mxu0 0.0
    %1000 = vmatprep.subr.mxu0 0.0
    %1001 = vmatpush2.msra.mxu0 0.0
    %1002 = vmatprep.subr.mxu0 0.0
    %1003 = vmatpush2.msra.mxu0 0.0
    %1004 = vmatprep.subr.mxu0 0.0
    %1005 = vmatpush2.msra.mxu0 0.0
    %1006 = vmatprep.subr.mxu0 0.0
    %1007 = vmatpush2.msra.mxu0 0.0
    %1008 = vmatprep.subr.mxu0 0.0
    %1009 = vmatpush2.msra.mxu0 0.0
    %1010 = vmatprep.subr.mxu0 0.0
    %1011 = vmatpush2.msra.mxu0 0.0
    %1012 = vmatprep.subr.mxu0 0.0
    %1013 = vmatpush2.msra.mxu0 0.0
    %1014 = vmatprep.subr.mxu0 0.0
    %1015 = vmatpush2.msra.mxu0 0.0
    %1016 = vmatprep.subr.mxu0 0.0
    %1017 = vmatpush2.msra.mxu0 0.0
    %1018 = vmatprep.subr.mxu0 0.0
    %1019 = vmatpush2.msra.mxu0 0.0
    %1020 = vmatprep.mubr.f32.mxu0 0.0
    %v1021 = vand.u32 %v816, 4294901760
    %1022 = vmatmul.mubr.f32.gmra.mxu0 %v1021
    %v1023 = vpop.f32.mrf.mxu0
    %v1024 = vadd.f32 %v903, %v1023
    %v1025 = vpop.f32.mrf.mxu0
    %1026 = vmatprep.mubr.f32.mxu0 0.0
    %v1027 = vand.u32 %v819, 4294901760
    %1028 = vmatmul.mubr.f32.gmra.mxu0 %v1027
    %v1029 = vpop.f32.mrf.mxu0
    %v1030 = vadd.f32 %v913, %v1029
    %v1031 = vpop.f32.mrf.mxu0
    %1032 = vmatprep.mubr.f32.mxu0 0.0
    %v1033 = vand.u32 %v822, 4294901760
    %1034 = vmatmul.mubr.f32.gmra.mxu0 %v1033
    %v1035 = vpop.f32.mrf.mxu0
    %v1036 = vadd.f32 %v923, %v1035
    %v1037 = vpop.f32.mrf.mxu0
    %1038 = vmatprep.mubr.f32.mxu0 0.0
    %v1039 = vand.u32 %v825, 4294901760
    %1040 = vmatmul.mubr.f32.gmra.mxu0 %v1039
    %v1041 = vpop.f32.mrf.mxu0
    %v1042 = vadd.f32 %v933, %v1041
    %v1043 = vpop.f32.mrf.mxu0
    %1044 = vdwg.mxu0
    %1045 = vmatprep.subr.mxu0 0.0
    %1046 = vmatpush1.msra.mxu0 0.0
    %1047 = vmatprep.subr.mxu0 0.0
    %1048 = vmatpush1.msra.mxu0 0.0
    %1049 = vmatprep.subr.mxu0 0.0
    %1050 = vmatpush1.msra.mxu0 0.0
    %1051 = vmatprep.subr.mxu0 0.0
    %1052 = vmatpush1.msra.mxu0 0.0
    %1053 = vmatprep.subr.mxu0 0.0
    %1054 = vmatpush1.msra.mxu0 0.0
    %1055 = vmatprep.subr.mxu0 0.0
    %1056 = vmatpush1.msra.mxu0 0.0
    %1057 = vmatprep.subr.mxu0 0.0
    %1058 = vmatpush1.msra.mxu0 0.0
    %1059 = vmatprep.subr.mxu0 0.0
    %1060 = vmatpush1.msra.mxu0 0.0
    %1061 = vmatprep.subr.mxu0 0.0
    %1062 = vmatpush1.msra.mxu0 0.0
    %1063 = vmatprep.subr.mxu0 0.0
    %1064 = vmatpush1.msra.mxu0 0.0
    %1065 = vmatprep.subr.mxu0 0.0
    %1066 = vmatpush1.msra.mxu0 0.0
    %1067 = vmatprep.subr.mxu0 0.0
    %1068 = vmatpush1.msra.mxu0 0.0
    %1069 = vmatprep.subr.mxu0 0.0
    %v1070 = vand.u32 %v786, 4294901760
    %v1071 = vsub.f32 %v786, %v1070
    %1072 = vmatpush1.msra.mxu0 %v1071
    %1073 = vmatprep.subr.mxu0 0.0
    %v1074 = vand.u32 %v785, 4294901760
    %v1075 = vsub.f32 %v785, %v1074
    %1076 = vmatpush1.msra.mxu0 %v1075
    %1077 = vmatprep.subr.mxu0 0.0
    %v1078 = vand.u32 %v784, 4294901760
    %v1079 = vsub.f32 %v784, %v1078
    %1080 = vmatpush1.msra.mxu0 %v1079
    %1081 = vmatprep.subr.mxu0 0.0
    %v1082 = vand.u32 %v783, 4294901760
    %v1083 = vsub.f32 %v783, %v1082
    %1084 = vmatpush1.msra.mxu0 %v1083
    %1085 = vmatprep.subr.mxu0 0.0
    %1086 = vmatpush2.msra.mxu0 0.0
    %1087 = vmatprep.subr.mxu0 0.0
    %1088 = vmatpush2.msra.mxu0 0.0
    %1089 = vmatprep.subr.mxu0 0.0
    %1090 = vmatpush2.msra.mxu0 0.0
    %1091 = vmatprep.subr.mxu0 0.0
    %1092 = vmatpush2.msra.mxu0 0.0
    %1093 = vmatprep.subr.mxu0 0.0
    %1094 = vmatpush2.msra.mxu0 0.0
    %1095 = vmatprep.subr.mxu0 0.0
    %1096 = vmatpush2.msra.mxu0 0.0
    %1097 = vmatprep.subr.mxu0 0.0
    %1098 = vmatpush2.msra.mxu0 0.0
    %1099 = vmatprep.subr.mxu0 0.0
    %1100 = vmatpush2.msra.mxu0 0.0
    %1101 = vmatprep.subr.mxu0 0.0
    %1102 = vmatpush2.msra.mxu0 0.0
    %1103 = vmatprep.subr.mxu0 0.0
    %1104 = vmatpush2.msra.mxu0 0.0
    %1105 = vmatprep.subr.mxu0 0.0
    %1106 = vmatpush2.msra.mxu0 0.0
    %1107 = vmatprep.subr.mxu0 0.0
    %1108 = vmatpush2.msra.mxu0 0.0
    %1109 = vmatprep.subr.mxu0 0.0
    %1110 = vmatpush2.msra.mxu0 0.0
    %1111 = vmatprep.subr.mxu0 0.0
    %1112 = vmatpush2.msra.mxu0 0.0
    %1113 = vmatprep.subr.mxu0 0.0
    %1114 = vmatpush2.msra.mxu0 0.0
    %1115 = vmatprep.subr.mxu0 0.0
    %1116 = vmatpush2.msra.mxu0 0.0
    %1117 = vmatprep.mubr.f32.mxu0 0.0
    %v1118 = vand.u32 %v816, 4294901760
    %v1119 = vsub.f32 %v816, %v1118
    %1120 = vmatmul.mubr.f32.gmra.mxu0 %v1119
    %v1121 = vpop.f32.mrf.mxu0
    %v1122 = vadd.f32 %v1024, %v1121
    %v1123 = vpop.f32.mrf.mxu0
    %1124 = vmatprep.mubr.f32.mxu0 0.0
    %v1125 = vand.u32 %v819, 4294901760
    %v1126 = vsub.f32 %v819, %v1125
    %1127 = vmatmul.mubr.f32.gmra.mxu0 %v1126
    %v1128 = vpop.f32.mrf.mxu0
    %v1129 = vadd.f32 %v1030, %v1128
    %v1130 = vpop.f32.mrf.mxu0
    %1131 = vmatprep.mubr.f32.mxu0 0.0
    %v1132 = vand.u32 %v822, 4294901760
    %v1133 = vsub.f32 %v822, %v1132
    %1134 = vmatmul.mubr.f32.gmra.mxu0 %v1133
    %v1135 = vpop.f32.mrf.mxu0
    %v1136 = vadd.f32 %v1036, %v1135
    %v1137 = vpop.f32.mrf.mxu0
    %1138 = vmatprep.mubr.f32.mxu0 0.0
    %v1139 = vand.u32 %v825, 4294901760
    %v1140 = vsub.f32 %v825, %v1139
    %1141 = vmatmul.mubr.f32.gmra.mxu0 %v1140
    %v1142 = vpop.f32.mrf.mxu0
    %v1143 = vadd.f32 %v1042, %v1142
    %v1144 = vpop.f32.mrf.mxu0
    %1145 = vdwg.mxu0
    %1146 = vmatprep.subr.mxu0 0.0
    %1147 = vmatpush1.msra.mxu0 0.0
    %1148 = vmatprep.subr.mxu0 0.0
    %1149 = vmatpush1.msra.mxu0 0.0
    %1150 = vmatprep.subr.mxu0 0.0
    %1151 = vmatpush1.msra.mxu0 0.0
    %1152 = vmatprep.subr.mxu0 0.0
    %1153 = vmatpush1.msra.mxu0 0.0
    %1154 = vmatprep.subr.mxu0 0.0
    %1155 = vmatpush1.msra.mxu0 0.0
    %1156 = vmatprep.subr.mxu0 0.0
    %1157 = vmatpush1.msra.mxu0 0.0
    %1158 = vmatprep.subr.mxu0 0.0
    %1159 = vmatpush1.msra.mxu0 0.0
    %1160 = vmatprep.subr.mxu0 0.0
    %1161 = vmatpush1.msra.mxu0 0.0
    %1162 = vmatprep.subr.mxu0 0.0
    %1163 = vmatpush1.msra.mxu0 0.0
    %1164 = vmatprep.subr.mxu0 0.0
    %1165 = vmatpush1.msra.mxu0 0.0
    %1166 = vmatprep.subr.mxu0 0.0
    %1167 = vmatpush1.msra.mxu0 0.0
    %1168 = vmatprep.subr.mxu0 0.0
    %1169 = vmatpush1.msra.mxu0 0.0
    %1170 = vmatprep.subr.mxu0 0.0
    %v1171 = vand.u32 %v786, 4294901760
    %1172 = vmatpush1.msra.mxu0 %v1171
    %1173 = vmatprep.subr.mxu0 0.0
    %v1174 = vand.u32 %v785, 4294901760
    %1175 = vmatpush1.msra.mxu0 %v1174
    %1176 = vmatprep.subr.mxu0 0.0
    %v1177 = vand.u32 %v784, 4294901760
    %1178 = vmatpush1.msra.mxu0 %v1177
    %1179 = vmatprep.subr.mxu0 0.0
    %v1180 = vand.u32 %v783, 4294901760
    %1181 = vmatpush1.msra.mxu0 %v1180
    %1182 = vmatprep.subr.mxu0 0.0
    %1183 = vmatpush2.msra.mxu0 0.0
    %1184 = vmatprep.subr.mxu0 0.0
    %1185 = vmatpush2.msra.mxu0 0.0
    %1186 = vmatprep.subr.mxu0 0.0
    %1187 = vmatpush2.msra.mxu0 0.0
    %1188 = vmatprep.subr.mxu0 0.0
    %1189 = vmatpush2.msra.mxu0 0.0
    %1190 = vmatprep.subr.mxu0 0.0
    %1191 = vmatpush2.msra.mxu0 0.0
    %1192 = vmatprep.subr.mxu0 0.0
    %1193 = vmatpush2.msra.mxu0 0.0
    %1194 = vmatprep.subr.mxu0 0.0
    %1195 = vmatpush2.msra.mxu0 0.0
    %1196 = vmatprep.subr.mxu0 0.0
    %1197 = vmatpush2.msra.mxu0 0.0
    %1198 = vmatprep.subr.mxu0 0.0
    %1199 = vmatpush2.msra.mxu0 0.0
    %1200 = vmatprep.subr.mxu0 0.0
    %1201 = vmatpush2.msra.mxu0 0.0
    %1202 = vmatprep.subr.mxu0 0.0
    %1203 = vmatpush2.msra.mxu0 0.0
    %1204 = vmatprep.subr.mxu0 0.0
    %1205 = vmatpush2.msra.mxu0 0.0
    %1206 = vmatprep.subr.mxu0 0.0
    %1207 = vmatpush2.msra.mxu0 0.0
    %1208 = vmatprep.subr.mxu0 0.0
    %1209 = vmatpush2.msra.mxu0 0.0
    %1210 = vmatprep.subr.mxu0 0.0
    %1211 = vmatpush2.msra.mxu0 0.0
    %1212 = vmatprep.subr.mxu0 0.0
    %1213 = vmatpush2.msra.mxu0 0.0
    %1214 = vmatprep.mubr.f32.mxu0 0.0
    %v1215 = vand.u32 %v816, 4294901760
    %v1216 = vsub.f32 %v816, %v1215
    %v1217 = vand.u32 %v1216, 4294901760
    %1218 = vmatmul.mubr.f32.gmra.mxu0 %v1217
    %v1219 = vpop.f32.mrf.mxu0
    %v1220 = vadd.f32 %v1122, %v1219
    %v1221 = vpop.f32.mrf.mxu0
    %1222 = vmatprep.mubr.f32.mxu0 0.0
    %v1223 = vand.u32 %v819, 4294901760
    %v1224 = vsub.f32 %v819, %v1223
    %v1225 = vand.u32 %v1224, 4294901760
    %1226 = vmatmul.mubr.f32.gmra.mxu0 %v1225
    %v1227 = vpop.f32.mrf.mxu0
    %v1228 = vadd.f32 %v1129, %v1227
    %v1229 = vpop.f32.mrf.mxu0
    %1230 = vmatprep.mubr.f32.mxu0 0.0
    %v1231 = vand.u32 %v822, 4294901760
    %v1232 = vsub.f32 %v822, %v1231
    %v1233 = vand.u32 %v1232, 4294901760
    %1234 = vmatmul.mubr.f32.gmra.mxu0 %v1233
    %v1235 = vpop.f32.mrf.mxu0
    %v1236 = vadd.f32 %v1136, %v1235
    %v1237 = vpop.f32.mrf.mxu0
    %1238 = vmatprep.mubr.f32.mxu0 0.0
    %v1239 = vand.u32 %v825, 4294901760
    %v1240 = vsub.f32 %v825, %v1239
    %v1241 = vand.u32 %v1240, 4294901760
    %1242 = vmatmul.mubr.f32.gmra.mxu0 %v1241
    %v1243 = vpop.f32.mrf.mxu0
    %v1244 = vadd.f32 %v1143, %v1243
    %v1245 = vpop.f32.mrf.mxu0
    %1246 = vdwg.mxu0
    %1247 = vmatprep.subr.mxu0 0.0
    %1248 = vmatpush1.msra.mxu0 0.0
    %1249 = vmatprep.subr.mxu0 0.0
    %1250 = vmatpush1.msra.mxu0 0.0
    %1251 = vmatprep.subr.mxu0 0.0
    %1252 = vmatpush1.msra.mxu0 0.0
    %1253 = vmatprep.subr.mxu0 0.0
    %1254 = vmatpush1.msra.mxu0 0.0
    %1255 = vmatprep.subr.mxu0 0.0
    %1256 = vmatpush1.msra.mxu0 0.0
    %1257 = vmatprep.subr.mxu0 0.0
    %1258 = vmatpush1.msra.mxu0 0.0
    %1259 = vmatprep.subr.mxu0 0.0
    %1260 = vmatpush1.msra.mxu0 0.0
    %1261 = vmatprep.subr.mxu0 0.0
    %1262 = vmatpush1.msra.mxu0 0.0
    %1263 = vmatprep.subr.mxu0 0.0
    %1264 = vmatpush1.msra.mxu0 0.0
    %1265 = vmatprep.subr.mxu0 0.0
    %1266 = vmatpush1.msra.mxu0 0.0
    %1267 = vmatprep.subr.mxu0 0.0
    %1268 = vmatpush1.msra.mxu0 0.0
    %1269 = vmatprep.subr.mxu0 0.0
    %1270 = vmatpush1.msra.mxu0 0.0
    %1271 = vmatprep.subr.mxu0 0.0
    %v1272 = vand.u32 %v786, 4294901760
    %v1273 = vsub.f32 %v786, %v1272
    %v1274 = vand.u32 %v1273, 4294901760
    %1275 = vmatpush1.msra.mxu0 %v1274
    %1276 = vmatprep.subr.mxu0 0.0
    %v1277 = vand.u32 %v785, 4294901760
    %v1278 = vsub.f32 %v785, %v1277
    %v1279 = vand.u32 %v1278, 4294901760
    %1280 = vmatpush1.msra.mxu0 %v1279
    %1281 = vmatprep.subr.mxu0 0.0
    %v1282 = vand.u32 %v784, 4294901760
    %v1283 = vsub.f32 %v784, %v1282
    %v1284 = vand.u32 %v1283, 4294901760
    %1285 = vmatpush1.msra.mxu0 %v1284
    %1286 = vmatprep.subr.mxu0 0.0
    %v1287 = vand.u32 %v783, 4294901760
    %v1288 = vsub.f32 %v783, %v1287
    %v1289 = vand.u32 %v1288, 4294901760
    %1290 = vmatpush1.msra.mxu0 %v1289
    %1291 = vmatprep.subr.mxu0 0.0
    %1292 = vmatpush2.msra.mxu0 0.0
    %1293 = vmatprep.subr.mxu0 0.0
    %1294 = vmatpush2.msra.mxu0 0.0
    %1295 = vmatprep.subr.mxu0 0.0
    %1296 = vmatpush2.msra.mxu0 0.0
    %1297 = vmatprep.subr.mxu0 0.0
    %1298 = vmatpush2.msra.mxu0 0.0
    %1299 = vmatprep.subr.mxu0 0.0
    %1300 = vmatpush2.msra.mxu0 0.0
    %1301 = vmatprep.subr.mxu0 0.0
    %1302 = vmatpush2.msra.mxu0 0.0
    %1303 = vmatprep.subr.mxu0 0.0
    %1304 = vmatpush2.msra.mxu0 0.0
    %1305 = vmatprep.subr.mxu0 0.0
    %1306 = vmatpush2.msra.mxu0 0.0
    %1307 = vmatprep.subr.mxu0 0.0
    %1308 = vmatpush2.msra.mxu0 0.0
    %1309 = vmatprep.subr.mxu0 0.0
    %1310 = vmatpush2.msra.mxu0 0.0
    %1311 = vmatprep.subr.mxu0 0.0
    %1312 = vmatpush2.msra.mxu0 0.0
    %1313 = vmatprep.subr.mxu0 0.0
    %1314 = vmatpush2.msra.mxu0 0.0
    %1315 = vmatprep.subr.mxu0 0.0
    %1316 = vmatpush2.msra.mxu0 0.0
    %1317 = vmatprep.subr.mxu0 0.0
    %1318 = vmatpush2.msra.mxu0 0.0
    %1319 = vmatprep.subr.mxu0 0.0
    %1320 = vmatpush2.msra.mxu0 0.0
    %1321 = vmatprep.subr.mxu0 0.0
    %1322 = vmatpush2.msra.mxu0 0.0
    %1323 = vmatprep.mubr.f32.mxu0 0.0
    %v1324 = vand.u32 %v816, 4294901760
    %1325 = vmatmul.mubr.f32.gmra.mxu0 %v1324
    %v1326 = vpop.f32.mrf.mxu0
    %v1327 = vadd.f32 %v1220, %v1326
    %v1328 = vpop.f32.mrf.mxu0
    %1329 = vmatprep.mubr.f32.mxu0 0.0
    %v1330 = vand.u32 %v819, 4294901760
    %1331 = vmatmul.mubr.f32.gmra.mxu0 %v1330
    %v1332 = vpop.f32.mrf.mxu0
    %v1333 = vadd.f32 %v1228, %v1332
    %v1334 = vpop.f32.mrf.mxu0
    %1335 = vmatprep.mubr.f32.mxu0 0.0
    %v1336 = vand.u32 %v822, 4294901760
    %1337 = vmatmul.mubr.f32.gmra.mxu0 %v1336
    %v1338 = vpop.f32.mrf.mxu0
    %v1339 = vadd.f32 %v1236, %v1338
    %v1340 = vpop.f32.mrf.mxu0
    %1341 = vmatprep.mubr.f32.mxu0 0.0
    %v1342 = vand.u32 %v825, 4294901760
    %1343 = vmatmul.mubr.f32.gmra.mxu0 %v1342
    %v1344 = vpop.f32.mrf.mxu0
    %v1345 = vadd.f32 %v1244, %v1344
    %v1346 = vpop.f32.mrf.mxu0
    %1347 = vdwg.mxu0
    %1348 = vmatprep.subr.mxu0 0.0
    %1349 = vmatpush1.msra.mxu0 0.0
    %1350 = vmatprep.subr.mxu0 0.0
    %1351 = vmatpush1.msra.mxu0 0.0
    %1352 = vmatprep.subr.mxu0 0.0
    %1353 = vmatpush1.msra.mxu0 0.0
    %1354 = vmatprep.subr.mxu0 0.0
    %1355 = vmatpush1.msra.mxu0 0.0
    %1356 = vmatprep.subr.mxu0 0.0
    %1357 = vmatpush1.msra.mxu0 0.0
    %1358 = vmatprep.subr.mxu0 0.0
    %1359 = vmatpush1.msra.mxu0 0.0
    %1360 = vmatprep.subr.mxu0 0.0
    %1361 = vmatpush1.msra.mxu0 0.0
    %1362 = vmatprep.subr.mxu0 0.0
    %1363 = vmatpush1.msra.mxu0 0.0
    %1364 = vmatprep.subr.mxu0 0.0
    %1365 = vmatpush1.msra.mxu0 0.0
    %1366 = vmatprep.subr.mxu0 0.0
    %1367 = vmatpush1.msra.mxu0 0.0
    %1368 = vmatprep.subr.mxu0 0.0
    %1369 = vmatpush1.msra.mxu0 0.0
    %1370 = vmatprep.subr.mxu0 0.0
    %1371 = vmatpush1.msra.mxu0 0.0
    %1372 = vmatprep.subr.mxu0 0.0
    %v1373 = vand.u32 %v786, 4294901760
    %1374 = vmatpush1.msra.mxu0 %v1373
    %1375 = vmatprep.subr.mxu0 0.0
    %v1376 = vand.u32 %v785, 4294901760
    %1377 = vmatpush1.msra.mxu0 %v1376
    %1378 = vmatprep.subr.mxu0 0.0
    %v1379 = vand.u32 %v784, 4294901760
    %1380 = vmatpush1.msra.mxu0 %v1379
    %1381 = vmatprep.subr.mxu0 0.0
    %v1382 = vand.u32 %v783, 4294901760
    %1383 = vmatpush1.msra.mxu0 %v1382
    %1384 = vmatprep.subr.mxu0 0.0
    %1385 = vmatpush2.msra.mxu0 0.0
    %1386 = vmatprep.subr.mxu0 0.0
    %1387 = vmatpush2.msra.mxu0 0.0
    %1388 = vmatprep.subr.mxu0 0.0
    %1389 = vmatpush2.msra.mxu0 0.0
    %1390 = vmatprep.subr.mxu0 0.0
    %1391 = vmatpush2.msra.mxu0 0.0
    %1392 = vmatprep.subr.mxu0 0.0
    %1393 = vmatpush2.msra.mxu0 0.0
    %1394 = vmatprep.subr.mxu0 0.0
    %1395 = vmatpush2.msra.mxu0 0.0
    %1396 = vmatprep.subr.mxu0 0.0
    %1397 = vmatpush2.msra.mxu0 0.0
    %1398 = vmatprep.subr.mxu0 0.0
    %1399 = vmatpush2.msra.mxu0 0.0
    %1400 = vmatprep.subr.mxu0 0.0
    %1401 = vmatpush2.msra.mxu0 0.0
    %1402 = vmatprep.subr.mxu0 0.0
    %1403 = vmatpush2.msra.mxu0 0.0
    %1404 = vmatprep.subr.mxu0 0.0
    %1405 = vmatpush2.msra.mxu0 0.0
    %1406 = vmatprep.subr.mxu0 0.0
    %1407 = vmatpush2.msra.mxu0 0.0
    %1408 = vmatprep.subr.mxu0 0.0
    %1409 = vmatpush2.msra.mxu0 0.0
    %1410 = vmatprep.subr.mxu0 0.0
    %1411 = vmatpush2.msra.mxu0 0.0
    %1412 = vmatprep.subr.mxu0 0.0
    %1413 = vmatpush2.msra.mxu0 0.0
    %1414 = vmatprep.subr.mxu0 0.0
    %1415 = vmatpush2.msra.mxu0 0.0
    %1416 = vmatprep.mubr.f32.mxu0 0.0
    %v1417 = vand.u32 %v816, 4294901760
    %1418 = vmatmul.mubr.f32.gmra.mxu0 %v1417
    %v1419 = vpop.f32.mrf.mxu0
    %v1420 = vadd.f32 %v1327, %v1419
    %v1421 = vpop.f32.mrf.mxu0
    %1422 = vmatprep.mubr.f32.mxu0 0.0
    %v1423 = vand.u32 %v819, 4294901760
    %1424 = vmatmul.mubr.f32.gmra.mxu0 %v1423
    %v1425 = vpop.f32.mrf.mxu0
    %v1426 = vadd.f32 %v1333, %v1425
    %v1427 = vpop.f32.mrf.mxu0
    %1428 = vmatprep.mubr.f32.mxu0 0.0
    %v1429 = vand.u32 %v822, 4294901760
    %1430 = vmatmul.mubr.f32.gmra.mxu0 %v1429
    %v1431 = vpop.f32.mrf.mxu0
    %v1432 = vadd.f32 %v1339, %v1431
    %v1433 = vpop.f32.mrf.mxu0
    %1434 = vmatprep.mubr.f32.mxu0 0.0
    %v1435 = vand.u32 %v825, 4294901760
    %1436 = vmatmul.mubr.f32.gmra.mxu0 %v1435
    %v1437 = vpop.f32.mrf.mxu0
    %v1438 = vadd.f32 %v1345, %v1437
    %v1439 = vpop.f32.mrf.mxu0
    %1440 = vdwg.mxu0
    %v1441 = vtanh.pop %v1420
    %v1442 = vtanh.pop %v1426
    %v1443 = vtanh.pop %v1432
    %v1444 = vtanh.pop %v1438
    %v1445 = vld [vmem:[%s7] sm:$0x1]
    %v1446 = vld [vmem:[#allocation2] sm:$0x1]
    %1448 = vset.pattern.permute.xlu0 0
    %1449 = vperm.xlu0 %1448, %v1446
    %v1450 = vpop.permute.xlu0 %1449
    %v1452 = vlaneseq
    %v1453 = vshrl.u32 %v1452, 7
    %v1454 = vsub.s32 0, %v1453
    %v1455 = vrot.slane %v1450, %v1454
    %v1457 = vsel %vm156, %v1445, 0
    %1459 = vmatprep.subr.mxu0 0.0
    %1460 = vmatpush1.msra.mxu0 0.0
    %1461 = vmatprep.subr.mxu0 0.0
    %1462 = vmatpush1.msra.mxu0 0.0
    %1463 = vmatprep.subr.mxu0 0.0
    %1464 = vmatpush1.msra.mxu0 0.0
    %1465 = vmatprep.subr.mxu0 0.0
    %1466 = vmatpush1.msra.mxu0 0.0
    %1467 = vmatprep.subr.mxu0 0.0
    %1468 = vmatpush1.msra.mxu0 0.0
    %1469 = vmatprep.subr.mxu0 0.0
    %1470 = vmatpush1.msra.mxu0 0.0
    %1471 = vmatprep.subr.mxu0 0.0
    %1472 = vmatpush1.msra.mxu0 0.0
    %1473 = vmatprep.subr.mxu0 0.0
    %1474 = vmatpush1.msra.mxu0 0.0
    %1475 = vmatprep.subr.mxu0 0.0
    %1476 = vmatpush1.msra.mxu0 0.0
    %1477 = vmatprep.subr.mxu0 0.0
    %1478 = vmatpush1.msra.mxu0 0.0
    %1479 = vmatprep.subr.mxu0 0.0
    %1480 = vmatpush1.msra.mxu0 0.0
    %1481 = vmatprep.subr.mxu0 0.0
    %1482 = vmatpush1.msra.mxu0 0.0
    %1483 = vmatprep.subr.mxu0 0.0
    %v1484 = vand.u32 %v1444, 4294901760
    %1485 = vmatpush1.msra.mxu0 %v1484
    %1486 = vmatprep.subr.mxu0 0.0
    %v1487 = vand.u32 %v1443, 4294901760
    %1488 = vmatpush1.msra.mxu0 %v1487
    %1489 = vmatprep.subr.mxu0 0.0
    %v1490 = vand.u32 %v1442, 4294901760
    %1491 = vmatpush1.msra.mxu0 %v1490
    %1492 = vmatprep.subr.mxu0 0.0
    %v1493 = vand.u32 %v1441, 4294901760
    %1494 = vmatpush1.msra.mxu0 %v1493
    %1495 = vmatprep.subr.mxu0 0.0
    %1496 = vmatpush2.msra.mxu0 0.0
    %1497 = vmatprep.subr.mxu0 0.0
    %1498 = vmatpush2.msra.mxu0 0.0
    %1499 = vmatprep.subr.mxu0 0.0
    %1500 = vmatpush2.msra.mxu0 0.0
    %1501 = vmatprep.subr.mxu0 0.0
    %1502 = vmatpush2.msra.mxu0 0.0
    %1503 = vmatprep.subr.mxu0 0.0
    %1504 = vmatpush2.msra.mxu0 0.0
    %1505 = vmatprep.subr.mxu0 0.0
    %1506 = vmatpush2.msra.mxu0 0.0
    %1507 = vmatprep.subr.mxu0 0.0
    %1508 = vmatpush2.msra.mxu0 0.0
    %1509 = vmatprep.subr.mxu0 0.0
    %1510 = vmatpush2.msra.mxu0 0.0
    %1511 = vmatprep.subr.mxu0 0.0
    %1512 = vmatpush2.msra.mxu0 0.0
    %1513 = vmatprep.subr.mxu0 0.0
    %1514 = vmatpush2.msra.mxu0 0.0
    %1515 = vmatprep.subr.mxu0 0.0
    %1516 = vmatpush2.msra.mxu0 0.0
    %1517 = vmatprep.subr.mxu0 0.0
    %1518 = vmatpush2.msra.mxu0 0.0
    %1519 = vmatprep.subr.mxu0 0.0
    %1520 = vmatpush2.msra.mxu0 0.0
    %1521 = vmatprep.subr.mxu0 0.0
    %1522 = vmatpush2.msra.mxu0 0.0
    %1523 = vmatprep.subr.mxu0 0.0
    %1524 = vmatpush2.msra.mxu0 0.0
    %1525 = vmatprep.subr.mxu0 0.0
    %1526 = vmatpush2.msra.mxu0 0.0
    %1527 = vmatprep.mubr.f32.mxu0 0.0
    %v1528 = vand.u32 %v1457, 4294901760
    %v1529 = vsub.f32 %v1457, %v1528
    %v1530 = vand.u32 %v1529, 4294901760
    %v1531 = vsub.f32 %v1529, %v1530
    %v1532 = vand.u32 %v1531, 4294901760
    %1533 = vmatmul.mubr.f32.gmra.mxu0 %v1532
    %v1534 = vpop.f32.mrf.mxu0
    %v1535 = vadd.f32 %v1455, %v1534
    %v1536 = vpop.f32.mrf.mxu0
    %1537 = vdwg.mxu0
    %1538 = vmatprep.subr.mxu0 0.0
    %1539 = vmatpush1.msra.mxu0 0.0
    %1540 = vmatprep.subr.mxu0 0.0
    %1541 = vmatpush1.msra.mxu0 0.0
    %1542 = vmatprep.subr.mxu0 0.0
    %1543 = vmatpush1.msra.mxu0 0.0
    %1544 = vmatprep.subr.mxu0 0.0
    %1545 = vmatpush1.msra.mxu0 0.0
    %1546 = vmatprep.subr.mxu0 0.0
    %1547 = vmatpush1.msra.mxu0 0.0
    %1548 = vmatprep.subr.mxu0 0.0
    %1549 = vmatpush1.msra.mxu0 0.0
    %1550 = vmatprep.subr.mxu0 0.0
    %1551 = vmatpush1.msra.mxu0 0.0
    %1552 = vmatprep.subr.mxu0 0.0
    %1553 = vmatpush1.msra.mxu0 0.0
    %1554 = vmatprep.subr.mxu0 0.0
    %1555 = vmatpush1.msra.mxu0 0.0
    %1556 = vmatprep.subr.mxu0 0.0
    %1557 = vmatpush1.msra.mxu0 0.0
    %1558 = vmatprep.subr.mxu0 0.0
    %1559 = vmatpush1.msra.mxu0 0.0
    %1560 = vmatprep.subr.mxu0 0.0
    %1561 = vmatpush1.msra.mxu0 0.0
    %1562 = vmatprep.subr.mxu0 0.0
    %v1563 = vand.u32 %v1444, 4294901760
    %v1564 = vsub.f32 %v1444, %v1563
    %v1565 = vand.u32 %v1564, 4294901760
    %v1566 = vsub.f32 %v1564, %v1565
    %v1567 = vand.u32 %v1566, 4294901760
    %1568 = vmatpush1.msra.mxu0 %v1567
    %1569 = vmatprep.subr.mxu0 0.0
    %v1570 = vand.u32 %v1443, 4294901760
    %v1571 = vsub.f32 %v1443, %v1570
    %v1572 = vand.u32 %v1571, 4294901760
    %v1573 = vsub.f32 %v1571, %v1572
    %v1574 = vand.u32 %v1573, 4294901760
    %1575 = vmatpush1.msra.mxu0 %v1574
    %1576 = vmatprep.subr.mxu0 0.0
    %v1577 = vand.u32 %v1442, 4294901760
    %v1578 = vsub.f32 %v1442, %v1577
    %v1579 = vand.u32 %v1578, 4294901760
    %v1580 = vsub.f32 %v1578, %v1579
    %v1581 = vand.u32 %v1580, 4294901760
    %1582 = vmatpush1.msra.mxu0 %v1581
    %1583 = vmatprep.subr.mxu0 0.0
    %v1584 = vand.u32 %v1441, 4294901760
    %v1585 = vsub.f32 %v1441, %v1584
    %v1586 = vand.u32 %v1585, 4294901760
    %v1587 = vsub.f32 %v1585, %v1586
    %v1588 = vand.u32 %v1587, 4294901760
    %1589 = vmatpush1.msra.mxu0 %v1588
    %1590 = vmatprep.subr.mxu0 0.0
    %1591 = vmatpush2.msra.mxu0 0.0
    %1592 = vmatprep.subr.mxu0 0.0
    %1593 = vmatpush2.msra.mxu0 0.0
    %1594 = vmatprep.subr.mxu0 0.0
    %1595 = vmatpush2.msra.mxu0 0.0
    %1596 = vmatprep.subr.mxu0 0.0
    %1597 = vmatpush2.msra.mxu0 0.0
    %1598 = vmatprep.subr.mxu0 0.0
    %1599 = vmatpush2.msra.mxu0 0.0
    %1600 = vmatprep.subr.mxu0 0.0
    %1601 = vmatpush2.msra.mxu0 0.0
    %1602 = vmatprep.subr.mxu0 0.0
    %1603 = vmatpush2.msra.mxu0 0.0
    %1604 = vmatprep.subr.mxu0 0.0
    %1605 = vmatpush2.msra.mxu0 0.0
    %1606 = vmatprep.subr.mxu0 0.0
    %1607 = vmatpush2.msra.mxu0 0.0
    %1608 = vmatprep.subr.mxu0 0.0
    %1609 = vmatpush2.msra.mxu0 0.0
    %1610 = vmatprep.subr.mxu0 0.0
    %1611 = vmatpush2.msra.mxu0 0.0
    %1612 = vmatprep.subr.mxu0 0.0
    %1613 = vmatpush2.msra.mxu0 0.0
    %1614 = vmatprep.subr.mxu0 0.0
    %1615 = vmatpush2.msra.mxu0 0.0
    %1616 = vmatprep.subr.mxu0 0.0
    %1617 = vmatpush2.msra.mxu0 0.0
    %1618 = vmatprep.subr.mxu0 0.0
    %1619 = vmatpush2.msra.mxu0 0.0
    %1620 = vmatprep.subr.mxu0 0.0
    %1621 = vmatpush2.msra.mxu0 0.0
    %1622 = vmatprep.mubr.f32.mxu0 0.0
    %v1623 = vand.u32 %v1457, 4294901760
    %1624 = vmatmul.mubr.f32.gmra.mxu0 %v1623
    %v1625 = vpop.f32.mrf.mxu0
    %v1626 = vadd.f32 %v1535, %v1625
    %v1627 = vpop.f32.mrf.mxu0
    %1628 = vdwg.mxu0
    %1629 = vmatprep.subr.mxu0 0.0
    %1630 = vmatpush1.msra.mxu0 0.0
    %1631 = vmatprep.subr.mxu0 0.0
    %1632 = vmatpush1.msra.mxu0 0.0
    %1633 = vmatprep.subr.mxu0 0.0
    %1634 = vmatpush1.msra.mxu0 0.0
    %1635 = vmatprep.subr.mxu0 0.0
    %1636 = vmatpush1.msra.mxu0 0.0
    %1637 = vmatprep.subr.mxu0 0.0
    %1638 = vmatpush1.msra.mxu0 0.0
    %1639 = vmatprep.subr.mxu0 0.0
    %1640 = vmatpush1.msra.mxu0 0.0
    %1641 = vmatprep.subr.mxu0 0.0
    %1642 = vmatpush1.msra.mxu0 0.0
    %1643 = vmatprep.subr.mxu0 0.0
    %1644 = vmatpush1.msra.mxu0 0.0
    %1645 = vmatprep.subr.mxu0 0.0
    %1646 = vmatpush1.msra.mxu0 0.0
    %1647 = vmatprep.subr.mxu0 0.0
    %1648 = vmatpush1.msra.mxu0 0.0
    %1649 = vmatprep.subr.mxu0 0.0
    %1650 = vmatpush1.msra.mxu0 0.0
    %1651 = vmatprep.subr.mxu0 0.0
    %1652 = vmatpush1.msra.mxu0 0.0
    %1653 = vmatprep.subr.mxu0 0.0
    %v1654 = vand.u32 %v1444, 4294901760
    %v1655 = vsub.f32 %v1444, %v1654
    %1656 = vmatpush1.msra.mxu0 %v1655
    %1657 = vmatprep.subr.mxu0 0.0
    %v1658 = vand.u32 %v1443, 4294901760
    %v1659 = vsub.f32 %v1443, %v1658
    %1660 = vmatpush1.msra.mxu0 %v1659
    %1661 = vmatprep.subr.mxu0 0.0
    %v1662 = vand.u32 %v1442, 4294901760
    %v1663 = vsub.f32 %v1442, %v1662
    %1664 = vmatpush1.msra.mxu0 %v1663
    %1665 = vmatprep.subr.mxu0 0.0
    %v1666 = vand.u32 %v1441, 4294901760
    %v1667 = vsub.f32 %v1441, %v1666
    %1668 = vmatpush1.msra.mxu0 %v1667
    %1669 = vmatprep.subr.mxu0 0.0
    %1670 = vmatpush2.msra.mxu0 0.0
    %1671 = vmatprep.subr.mxu0 0.0
    %1672 = vmatpush2.msra.mxu0 0.0
    %1673 = vmatprep.subr.mxu0 0.0
    %1674 = vmatpush2.msra.mxu0 0.0
    %1675 = vmatprep.subr.mxu0 0.0
    %1676 = vmatpush2.msra.mxu0 0.0
    %1677 = vmatprep.subr.mxu0 0.0
    %1678 = vmatpush2.msra.mxu0 0.0
    %1679 = vmatprep.subr.mxu0 0.0
    %1680 = vmatpush2.msra.mxu0 0.0
    %1681 = vmatprep.subr.mxu0 0.0
    %1682 = vmatpush2.msra.mxu0 0.0
    %1683 = vmatprep.subr.mxu0 0.0
    %1684 = vmatpush2.msra.mxu0 0.0
    %1685 = vmatprep.subr.mxu0 0.0
    %1686 = vmatpush2.msra.mxu0 0.0
    %1687 = vmatprep.subr.mxu0 0.0
    %1688 = vmatpush2.msra.mxu0 0.0
    %1689 = vmatprep.subr.mxu0 0.0
    %1690 = vmatpush2.msra.mxu0 0.0
    %1691 = vmatprep.subr.mxu0 0.0
    %1692 = vmatpush2.msra.mxu0 0.0
    %1693 = vmatprep.subr.mxu0 0.0
    %1694 = vmatpush2.msra.mxu0 0.0
    %1695 = vmatprep.subr.mxu0 0.0
    %1696 = vmatpush2.msra.mxu0 0.0
    %1697 = vmatprep.subr.mxu0 0.0
    %1698 = vmatpush2.msra.mxu0 0.0
    %1699 = vmatprep.subr.mxu0 0.0
    %1700 = vmatpush2.msra.mxu0 0.0
    %1701 = vmatprep.mubr.f32.mxu0 0.0
    %v1702 = vand.u32 %v1457, 4294901760
    %v1703 = vsub.f32 %v1457, %v1702
    %1704 = vmatmul.mubr.f32.gmra.mxu0 %v1703
    %v1705 = vpop.f32.mrf.mxu0
    %v1706 = vadd.f32 %v1626, %v1705
    %v1707 = vpop.f32.mrf.mxu0
    %1708 = vdwg.mxu0
    %1709 = vmatprep.subr.mxu0 0.0
    %1710 = vmatpush1.msra.mxu0 0.0
    %1711 = vmatprep.subr.mxu0 0.0
    %1712 = vmatpush1.msra.mxu0 0.0
    %1713 = vmatprep.subr.mxu0 0.0
    %1714 = vmatpush1.msra.mxu0 0.0
    %1715 = vmatprep.subr.mxu0 0.0
    %1716 = vmatpush1.msra.mxu0 0.0
    %1717 = vmatprep.subr.mxu0 0.0
    %1718 = vmatpush1.msra.mxu0 0.0
    %1719 = vmatprep.subr.mxu0 0.0
    %1720 = vmatpush1.msra.mxu0 0.0
    %1721 = vmatprep.subr.mxu0 0.0
    %1722 = vmatpush1.msra.mxu0 0.0
    %1723 = vmatprep.subr.mxu0 0.0
    %1724 = vmatpush1.msra.mxu0 0.0
    %1725 = vmatprep.subr.mxu0 0.0
    %1726 = vmatpush1.msra.mxu0 0.0
    %1727 = vmatprep.subr.mxu0 0.0
    %1728 = vmatpush1.msra.mxu0 0.0
    %1729 = vmatprep.subr.mxu0 0.0
    %1730 = vmatpush1.msra.mxu0 0.0
    %1731 = vmatprep.subr.mxu0 0.0
    %1732 = vmatpush1.msra.mxu0 0.0
    %1733 = vmatprep.subr.mxu0 0.0
    %v1734 = vand.u32 %v1444, 4294901760
    %1735 = vmatpush1.msra.mxu0 %v1734
    %1736 = vmatprep.subr.mxu0 0.0
    %v1737 = vand.u32 %v1443, 4294901760
    %1738 = vmatpush1.msra.mxu0 %v1737
    %1739 = vmatprep.subr.mxu0 0.0
    %v1740 = vand.u32 %v1442, 4294901760
    %1741 = vmatpush1.msra.mxu0 %v1740
    %1742 = vmatprep.subr.mxu0 0.0
    %v1743 = vand.u32 %v1441, 4294901760
    %1744 = vmatpush1.msra.mxu0 %v1743
    %1745 = vmatprep.subr.mxu0 0.0
    %1746 = vmatpush2.msra.mxu0 0.0
    %1747 = vmatprep.subr.mxu0 0.0
    %1748 = vmatpush2.msra.mxu0 0.0
    %1749 = vmatprep.subr.mxu0 0.0
    %1750 = vmatpush2.msra.mxu0 0.0
    %1751 = vmatprep.subr.mxu0 0.0
    %1752 = vmatpush2.msra.mxu0 0.0
    %1753 = vmatprep.subr.mxu0 0.0
    %1754 = vmatpush2.msra.mxu0 0.0
    %1755 = vmatprep.subr.mxu0 0.0
    %1756 = vmatpush2.msra.mxu0 0.0
    %1757 = vmatprep.subr.mxu0 0.0
    %1758 = vmatpush2.msra.mxu0 0.0
    %1759 = vmatprep.subr.mxu0 0.0
    %1760 = vmatpush2.msra.mxu0 0.0
    %1761 = vmatprep.subr.mxu0 0.0
    %1762 = vmatpush2.msra.mxu0 0.0
    %1763 = vmatprep.subr.mxu0 0.0
    %1764 = vmatpush2.msra.mxu0 0.0
    %1765 = vmatprep.subr.mxu0 0.0
    %1766 = vmatpush2.msra.mxu0 0.0
    %1767 = vmatprep.subr.mxu0 0.0
    %1768 = vmatpush2.msra.mxu0 0.0
    %1769 = vmatprep.subr.mxu0 0.0
    %1770 = vmatpush2.msra.mxu0 0.0
    %1771 = vmatprep.subr.mxu0 0.0
    %1772 = vmatpush2.msra.mxu0 0.0
    %1773 = vmatprep.subr.mxu0 0.0
    %1774 = vmatpush2.msra.mxu0 0.0
    %1775 = vmatprep.subr.mxu0 0.0
    %1776 = vmatpush2.msra.mxu0 0.0
    %1777 = vmatprep.mubr.f32.mxu0 0.0
    %v1778 = vand.u32 %v1457, 4294901760
    %v1779 = vsub.f32 %v1457, %v1778
    %v1780 = vand.u32 %v1779, 4294901760
    %1781 = vmatmul.mubr.f32.gmra.mxu0 %v1780
    %v1782 = vpop.f32.mrf.mxu0
    %v1783 = vadd.f32 %v1706, %v1782
    %v1784 = vpop.f32.mrf.mxu0
    %1785 = vdwg.mxu0
    %1786 = vmatprep.subr.mxu0 0.0
    %1787 = vmatpush1.msra.mxu0 0.0
    %1788 = vmatprep.subr.mxu0 0.0
    %1789 = vmatpush1.msra.mxu0 0.0
    %1790 = vmatprep.subr.mxu0 0.0
    %1791 = vmatpush1.msra.mxu0 0.0
    %1792 = vmatprep.subr.mxu0 0.0
    %1793 = vmatpush1.msra.mxu0 0.0
    %1794 = vmatprep.subr.mxu0 0.0
    %1795 = vmatpush1.msra.mxu0 0.0
    %1796 = vmatprep.subr.mxu0 0.0
    %1797 = vmatpush1.msra.mxu0 0.0
    %1798 = vmatprep.subr.mxu0 0.0
    %1799 = vmatpush1.msra.mxu0 0.0
    %1800 = vmatprep.subr.mxu0 0.0
    %1801 = vmatpush1.msra.mxu0 0.0
    %1802 = vmatprep.subr.mxu0 0.0
    %1803 = vmatpush1.msra.mxu0 0.0
    %1804 = vmatprep.subr.mxu0 0.0
    %1805 = vmatpush1.msra.mxu0 0.0
    %1806 = vmatprep.subr.mxu0 0.0
    %1807 = vmatpush1.msra.mxu0 0.0
    %1808 = vmatprep.subr.mxu0 0.0
    %1809 = vmatpush1.msra.mxu0 0.0
    %1810 = vmatprep.subr.mxu0 0.0
    %v1811 = vand.u32 %v1444, 4294901760
    %v1812 = vsub.f32 %v1444, %v1811
    %v1813 = vand.u32 %v1812, 4294901760
    %1814 = vmatpush1.msra.mxu0 %v1813
    %1815 = vmatprep.subr.mxu0 0.0
    %v1816 = vand.u32 %v1443, 4294901760
    %v1817 = vsub.f32 %v1443, %v1816
    %v1818 = vand.u32 %v1817, 4294901760
    %1819 = vmatpush1.msra.mxu0 %v1818
    %1820 = vmatprep.subr.mxu0 0.0
    %v1821 = vand.u32 %v1442, 4294901760
    %v1822 = vsub.f32 %v1442, %v1821
    %v1823 = vand.u32 %v1822, 4294901760
    %1824 = vmatpush1.msra.mxu0 %v1823
    %1825 = vmatprep.subr.mxu0 0.0
    %v1826 = vand.u32 %v1441, 4294901760
    %v1827 = vsub.f32 %v1441, %v1826
    %v1828 = vand.u32 %v1827, 4294901760
    %1829 = vmatpush1.msra.mxu0 %v1828
    %1830 = vmatprep.subr.mxu0 0.0
    %1831 = vmatpush2.msra.mxu0 0.0
    %1832 = vmatprep.subr.mxu0 0.0
    %1833 = vmatpush2.msra.mxu0 0.0
    %1834 = vmatprep.subr.mxu0 0.0
    %1835 = vmatpush2.msra.mxu0 0.0
    %1836 = vmatprep.subr.mxu0 0.0
    %1837 = vmatpush2.msra.mxu0 0.0
    %1838 = vmatprep.subr.mxu0 0.0
    %1839 = vmatpush2.msra.mxu0 0.0
    %1840 = vmatprep.subr.mxu0 0.0
    %1841 = vmatpush2.msra.mxu0 0.0
    %1842 = vmatprep.subr.mxu0 0.0
    %1843 = vmatpush2.msra.mxu0 0.0
    %1844 = vmatprep.subr.mxu0 0.0
    %1845 = vmatpush2.msra.mxu0 0.0
    %1846 = vmatprep.subr.mxu0 0.0
    %1847 = vmatpush2.msra.mxu0 0.0
    %1848 = vmatprep.subr.mxu0 0.0
    %1849 = vmatpush2.msra.mxu0 0.0
    %1850 = vmatprep.subr.mxu0 0.0
    %1851 = vmatpush2.msra.mxu0 0.0
    %1852 = vmatprep.subr.mxu0 0.0
    %1853 = vmatpush2.msra.mxu0 0.0
    %1854 = vmatprep.subr.mxu0 0.0
    %1855 = vmatpush2.msra.mxu0 0.0
    %1856 = vmatprep.subr.mxu0 0.0
    %1857 = vmatpush2.msra.mxu0 0.0
    %1858 = vmatprep.subr.mxu0 0.0
    %1859 = vmatpush2.msra.mxu0 0.0
    %1860 = vmatprep.subr.mxu0 0.0
    %1861 = vmatpush2.msra.mxu0 0.0
    %1862 = vmatprep.mubr.f32.mxu0 0.0
    %v1863 = vand.u32 %v1457, 4294901760
    %1864 = vmatmul.mubr.f32.gmra.mxu0 %v1863
    %v1865 = vpop.f32.mrf.mxu0
    %v1866 = vadd.f32 %v1783, %v1865
    %v1867 = vpop.f32.mrf.mxu0
    %1868 = vdwg.mxu0
    %1869 = vmatprep.subr.mxu0 0.0
    %1870 = vmatpush1.msra.mxu0 0.0
    %1871 = vmatprep.subr.mxu0 0.0
    %1872 = vmatpush1.msra.mxu0 0.0
    %1873 = vmatprep.subr.mxu0 0.0
    %1874 = vmatpush1.msra.mxu0 0.0
    %1875 = vmatprep.subr.mxu0 0.0
    %1876 = vmatpush1.msra.mxu0 0.0
    %1877 = vmatprep.subr.mxu0 0.0
    %1878 = vmatpush1.msra.mxu0 0.0
    %1879 = vmatprep.subr.mxu0 0.0
    %1880 = vmatpush1.msra.mxu0 0.0
    %1881 = vmatprep.subr.mxu0 0.0
    %1882 = vmatpush1.msra.mxu0 0.0
    %1883 = vmatprep.subr.mxu0 0.0
    %1884 = vmatpush1.msra.mxu0 0.0
    %1885 = vmatprep.subr.mxu0 0.0
    %1886 = vmatpush1.msra.mxu0 0.0
    %1887 = vmatprep.subr.mxu0 0.0
    %1888 = vmatpush1.msra.mxu0 0.0
    %1889 = vmatprep.subr.mxu0 0.0
    %1890 = vmatpush1.msra.mxu0 0.0
    %1891 = vmatprep.subr.mxu0 0.0
    %1892 = vmatpush1.msra.mxu0 0.0
    %1893 = vmatprep.subr.mxu0 0.0
    %v1894 = vand.u32 %v1444, 4294901760
    %1895 = vmatpush1.msra.mxu0 %v1894
    %1896 = vmatprep.subr.mxu0 0.0
    %v1897 = vand.u32 %v1443, 4294901760
    %1898 = vmatpush1.msra.mxu0 %v1897
    %1899 = vmatprep.subr.mxu0 0.0
    %v1900 = vand.u32 %v1442, 4294901760
    %1901 = vmatpush1.msra.mxu0 %v1900
    %1902 = vmatprep.subr.mxu0 0.0
    %v1903 = vand.u32 %v1441, 4294901760
    %1904 = vmatpush1.msra.mxu0 %v1903
    %1905 = vmatprep.subr.mxu0 0.0
    %1906 = vmatpush2.msra.mxu0 0.0
    %1907 = vmatprep.subr.mxu0 0.0
    %1908 = vmatpush2.msra.mxu0 0.0
    %1909 = vmatprep.subr.mxu0 0.0
    %1910 = vmatpush2.msra.mxu0 0.0
    %1911 = vmatprep.subr.mxu0 0.0
    %1912 = vmatpush2.msra.mxu0 0.0
    %1913 = vmatprep.subr.mxu0 0.0
    %1914 = vmatpush2.msra.mxu0 0.0
    %1915 = vmatprep.subr.mxu0 0.0
    %1916 = vmatpush2.msra.mxu0 0.0
    %1917 = vmatprep.subr.mxu0 0.0
    %1918 = vmatpush2.msra.mxu0 0.0
    %1919 = vmatprep.subr.mxu0 0.0
    %1920 = vmatpush2.msra.mxu0 0.0
    %1921 = vmatprep.subr.mxu0 0.0
    %1922 = vmatpush2.msra.mxu0 0.0
    %1923 = vmatprep.subr.mxu0 0.0
    %1924 = vmatpush2.msra.mxu0 0.0
    %1925 = vmatprep.subr.mxu0 0.0
    %1926 = vmatpush2.msra.mxu0 0.0
    %1927 = vmatprep.subr.mxu0 0.0
    %1928 = vmatpush2.msra.mxu0 0.0
    %1929 = vmatprep.subr.mxu0 0.0
    %1930 = vmatpush2.msra.mxu0 0.0
    %1931 = vmatprep.subr.mxu0 0.0
    %1932 = vmatpush2.msra.mxu0 0.0
    %1933 = vmatprep.subr.mxu0 0.0
    %1934 = vmatpush2.msra.mxu0 0.0
    %1935 = vmatprep.subr.mxu0 0.0
    %1936 = vmatpush2.msra.mxu0 0.0
    %1937 = vmatprep.mubr.f32.mxu0 0.0
    %v1938 = vand.u32 %v1457, 4294901760
    %1939 = vmatmul.mubr.f32.gmra.mxu0 %v1938
    %v1940 = vpop.f32.mrf.mxu0
    %v1941 = vadd.f32 %v1866, %v1940
    %v1942 = vpop.f32.mrf.mxu0
    %1943 = vdwg.mxu0
    %1944 = vst [vmem:[#allocation3] sm:$0x1] %v1941
    // Predicated region
    $region38: #{tpu_custom_call.1} parent=1 // pred_check
      _
    $region39: #{tpu_custom_call.1} parent=1 // pred_check_branch
      %1946 = sbr.rel (0) target = $region41
    $region40: #{tpu_custom_call.1} parent=1 // pred_region
      %s1948 = ssub.s32 16, 16
      %1949 = vsyncadd [#allocation4], %s1948
      %s1951 = sshll.u32 [#allocation3], 4
      %s1952 = int_to_ptr.vmem [resolvable:$true] %s1951
      %1954 = dma.vmem_to_hbm [thread:$0]  %s1952, 16, %s9, [#allocation4]
    $region41: #{tpu_custom_call.1} parent=1 // pred_fallthru
      _
    // Predicated region
    $region42: #{tpu_custom_call.1} parent=1 // pred_check
      _
    $region43: #{tpu_custom_call.1} parent=1 // pred_check_branch
      %1956 = sbr.rel (0) target = $region45
    $region44: #{tpu_custom_call.1} parent=1 // pred_region
      %1957 = dma.done [#allocation4], 16
    $region45: #{tpu_custom_call.1} parent=1 // pred_fallthru
      _
    %1958 = vsyncpa [#allocation4], 1

</llo_original>
